<compile_context>
chip_gen: v5e
topology: v5e:2x2
jax: 0.10.0
libtpu: 0.0.40
codegen_flags: <defaults>
</compile_context>

<pallas_src>
import functools

import jax
import jax.numpy as jnp
import numpy as np
from jax.experimental import pallas as pl
from jax.experimental.pallas import tpu as pltpu


def _round_up(x, m):
    return ((x + m - 1) // m) * m


def _tt_bag_kernel(idx_ref, bag_ref, c0_hbm, t12_hbm, red_hbm, o_ref,
                   c0_vmem, t12_vmem, red_vmem):
    """One lookup tile: bf16 one-hot gathers, TT contraction, bag sum-pool accumulate."""
    t = pl.program_id(1)

    @pl.when(t == 0)
    def _init():
        # Single-buffered weight tables: copy HBM -> persistent VMEM scratch once per split
        # (avoids the pipeline double-buffering constant-index inputs; copies are tiny).
        pltpu.sync_copy(c0_hbm, c0_vmem)
        pltpu.sync_copy(t12_hbm, t12_vmem)
        pltpu.sync_copy(red_hbm, red_vmem)
        o_ref[...] = jnp.zeros_like(o_ref)

    tile_n = idx_ref.shape[0]
    p0 = c0_vmem.shape[0]
    p12 = t12_vmem.shape[0]
    q0 = c0_vmem.shape[1] // t12_vmem.shape[1]          # replication factor (static)
    num_bags_pad = o_ref.shape[0]

    i0 = idx_ref[:, 0:1]                                 # (tile_n, 1) int32
    i12 = idx_ref[:, 1:2]                                # (tile_n, 1) int32

    # In-kernel gather of TT factors as bf16 one-hot MXU matmuls (tables stay VMEM-resident).
    oh0 = (i0 == jax.lax.broadcasted_iota(jnp.int32, (tile_n, p0), 1)).astype(jnp.bfloat16)
    oh12 = (i12 == jax.lax.broadcasted_iota(jnp.int32, (tile_n, p12), 1)).astype(jnp.bfloat16)
    a_rep = jnp.dot(oh0, c0_vmem[...], preferred_element_type=jnp.float32)   # (tile_n, q0*r1*q12)
    t_g = jnp.dot(oh12, t12_vmem[...], preferred_element_type=jnp.float32)   # (tile_n, r1*q12)

    # Replicate the un-tiled cores-1&2 gather q0x along lanes (128-aligned block copies), then
    # contract over r1 via elementwise product + 0/1 bf16 reduction matmul (truncation to
    # embedding_dim is baked into red, so the output store stays unmasked 128-lane dense).
    t_rep = jnp.concatenate([t_g] * q0, axis=1)                               # (tile_n, q0*r1*q12)
    prod = (a_rep * t_rep).astype(jnp.bfloat16)
    emb = jnp.dot(prod, red_vmem[...], preferred_element_type=jnp.float32)    # (tile_n, d_pad)

    # Sum pooling over bags as a bf16 one-hot matmul; padded lookups carry bag id -1 -> dropped.
    rows = jax.lax.broadcasted_iota(jnp.int32, (num_bags_pad, tile_n), 0)
    pool = (rows == bag_ref[...]).astype(jnp.bfloat16)                        # (num_bags_pad, tile_n)
    o_ref[...] += jnp.dot(pool, emb.astype(jnp.bfloat16),
                          preferred_element_type=jnp.float32)


@functools.partial(
    jax.jit,
    static_argnames=("p1p2", "embedding_dim", "tile_n", "num_parallel", "vmem_limit_bytes"))
def _tt_embedding_bag_fwd(indices, offsets, core0_rep, t12, red2, *,
                          p1p2, embedding_dim, tile_n, num_parallel, vmem_limit_bytes):
    n = indices.shape[0]
    num_bags = offsets.shape[0] - 1

    indices = indices.astype(jnp.int32)
    i0 = indices // p1p2                       # first TT index
    i12 = indices % p1p2                       # fused (i1, i2) TT index
    # Bag id of every lookup (lookups at/after offsets[-1] land in a dropped bag).
    bag_ids = (jnp.searchsorted(offsets.astype(jnp.int32),
                                jnp.arange(n, dtype=jnp.int32),
                                side="right") - 1).astype(jnp.int32)

    # Tile / split geometry (static): shrink the tile for tiny batches, keep it a 128-multiple,
    # then split the tile range across a leading "parallel" grid axis (v7x megacore).
    tile = _round_up(min(tile_n, _round_up(max(n, 1), 128)), 128)
    n_tiles = max(1, -(-n // tile))
    splits = max(1, min(num_parallel, n_tiles))
    tiles_per_split = -(-n_tiles // splits)
    n_pad = splits * tiles_per_split * tile
    pad = n_pad - n

    idx_pack = jnp.stack([i0, i12], axis=1)                        # (n, 2) int32, one DMA per tile
    idx_pack = jnp.pad(idx_pack, ((0, pad), (0, 0)))
    bag_row = jnp.pad(bag_ids, (0, pad), constant_values=-1).reshape(1, n_pad)

    bags_pad = max(8, _round_up(num_bags, 8))                      # sublane-aligned output rows
    d_pad = red2.shape[1]                                          # lane-dense output width

    out = pl.pallas_call(
        _tt_bag_kernel,
        out_shape=jax.ShapeDtypeStruct((splits * bags_pad, d_pad), jnp.float32),
        grid_spec=pltpu.PrefetchScalarGridSpec(
            num_scalar_prefetch=0,
            grid=(splits, tiles_per_split),
            in_specs=[
                pl.BlockSpec((tile, 2), lambda s, t: (s * tiles_per_split + t, 0)),
                pl.BlockSpec((1, tile), lambda s, t: (0, s * tiles_per_split + t)),
                pl.BlockSpec(memory_space=pl.ANY),     # core0_rep (bf16), single-buffered
                pl.BlockSpec(memory_space=pl.ANY),     # t12       (bf16), single-buffered
                pl.BlockSpec(memory_space=pl.ANY),     # red2      (bf16), single-buffered
            ],
            out_specs=pl.BlockSpec((bags_pad, d_pad), lambda s, t: (s, 0)),
            scratch_shapes=[
                pltpu.VMEM(core0_rep.shape, jnp.bfloat16),
                pltpu.VMEM(t12.shape, jnp.bfloat16),
                pltpu.VMEM(red2.shape, jnp.bfloat16),
            ],
        ),
        compiler_params=pltpu.CompilerParams(
            dimension_semantics=("parallel", "arbitrary"),   # split axis parallel, lookup tiles accumulate
            vmem_limit_bytes=vmem_limit_bytes,
        ),
    )(idx_pack, bag_row, core0_rep, t12, red2)

    out = out.reshape(splits, bags_pad, d_pad).sum(axis=0)
    return out[:num_bags, :embedding_dim]


class FBTTEmbeddingBagPallas:
    """Inference-only JAX/Pallas port of FBTTEmbeddingBag (forward pass)."""

    def __init__(self, num_embeddings, embedding_dim, tt_ranks,
                 tt_q_shapes, tt_p_shapes, num_micros=0, seed=0,
                 tile_n=1024, num_parallel=2, vmem_limit_bytes=48 * 1024 * 1024):
        assert int(np.prod(tt_p_shapes)) >= num_embeddings
        assert int(np.prod(tt_q_shapes)) >= embedding_dim
        self.p = tuple(int(x) for x in tt_p_shapes)
        self.q = tuple(int(x) for x in tt_q_shapes)
        self.r = (1,) + tuple(int(x) for x in tt_ranks) + (1,)
        self.embedding_dim = int(embedding_dim)
        self.num_micros = int(num_micros)
        # Per-generation tunables: tile_n 1024-2048 (cap on v7x so f32 intermediates fit 64 MiB),
        # vmem_limit >=32 MiB on v5e, ~48 MiB leaves headroom on v7x's 64 MiB physical VMEM.
        self.tile_n = int(tile_n)
        self.num_parallel = int(num_parallel)
        self.vmem_limit_bytes = int(vmem_limit_bytes)

        # weight_dist='normal': deterministic normal init; core t has shape (p_t, r_t*q_t*r_{t+1}).
        key = jax.random.PRNGKey(seed)
        cores = []
        for t in range(len(self.p)):
            key, sub = jax.random.split(key)
            shape = (self.p[t], self.r[t] * self.q[t] * self.r[t + 1])
            cores.append(0.1 * jax.random.normal(sub, shape, dtype=jnp.float32))
        self.tt_cores = tuple(cores)

        # ---------------- weight-only precompute feeding the kernel (bf16 tables) ----------------
        p0, p1, p2 = self.p
        q0, q1, q2 = self.q
        r1, r2 = self.r[1], self.r[2]
        q12 = q1 * q2
        d_pad = _round_up(self.embedding_dim, 128)          # lane-dense output width

        # core0 columns replicated q12 times: one-hot gather directly yields the replicated LHS.
        self.core0_rep = jnp.repeat(cores[0], q12, axis=1).astype(jnp.bfloat16)   # (p0, q0*r1*q12)

        # cores 1 & 2 pre-contracted over r2 into T12, kept UN-replicated (no q0 pre-tiling):
        # the q0x replication happens in-kernel as lane-block copies of the gathered rows.
        c1 = cores[1].reshape(p1, r1, q1, r2)
        c2 = cores[2].reshape(p2, r2, q2)
        t12_f32 = jnp.einsum("arbs,csd->acrbd", c1, c2).reshape(p1 * p2, r1 * q12)
        self.t12 = t12_f32.astype(jnp.bfloat16)                                   # (p1*p2, r1*q12)

        # 0/1 reduction matrix: sums over r1 and scatters (d0, d12) to the padded output column,
        # already truncated to embedding_dim (exact in bf16).
        j = np.arange(q0 * r1 * q12)
        col = (j // (r1 * q12)) * q12 + (j % q12)                                 # d0*q12 + d12
        red = np.zeros((q0 * r1 * q12, d_pad), np.float32)
        keep = col < self.embedding_dim
        red[j[keep], col[keep]] = 1.0
        self.red2 = jnp.asarray(red, dtype=jnp.bfloat16)

    def __call__(self, indices, offsets):
        # num_micros > 0 only sets the backend's batch_count; forward output is identical.
        return _tt_embedding_bag_fwd(
            jnp.asarray(indices, dtype=jnp.int32),
            jnp.asarray(offsets, dtype=jnp.int32),
            self.core0_rep, self.t12, self.red2,
            p1p2=self.p[1] * self.p[2],
            embedding_dim=self.embedding_dim,
            tile_n=self.tile_n,
            num_parallel=self.num_parallel,
            vmem_limit_bytes=self.vmem_limit_bytes)


def _reference(indices, offsets, cores, p, q, r, embedding_dim):
    """Pure-JAX f32 reference (straight TT math, no Pallas, no precompute)."""
    p0, p1, p2 = p
    q0, q1, q2 = q
    n = indices.shape[0]
    i0 = indices // (p1 * p2)
    i1 = (indices // p2) % p1
    i2 = indices % p2
    a = cores[0][i0].reshape(n, q0, r[1])
    b = cores[1][i1].reshape(n, r[1], q1, r[2])
    c = cores[2][i2].reshape(n, r[2], q2)
    emb = jnp.einsum('nar,nrbs,nsc->nabc', a, b, c).reshape(n, -1)[:, :embedding_dim]
    num_bags = offsets.shape[0] - 1
    bag_ids = jnp.searchsorted(offsets, jnp.arange(n), side='right') - 1
    return jnp.zeros((num_bags, embedding_dim), jnp.float32).at[bag_ids].add(emb)


if __name__ == "__main__":
    # Small TT-embedding config: 256 rows = 8*8*4, dim 64 = 4*4*4, TT ranks (16, 16).
    num_embeddings = 256
    embedding_dim = 64
    tt_p_shapes = (8, 8, 4)
    tt_q_shapes = (4, 4, 4)
    tt_ranks = (16, 16)

    module = FBTTEmbeddingBagPallas(num_embeddings, embedding_dim, tt_ranks,
                                    tt_q_shapes, tt_p_shapes, num_micros=2, seed=0)

    key = jax.random.PRNGKey(0)
    n_indices = 32
    indices = jax.random.randint(key, (n_indices,), 0, num_embeddings, dtype=jnp.int32)
    # 8 bags (one deliberately empty), offsets[-1] == n_indices
    offsets = jnp.array([0, 3, 7, 7, 12, 18, 25, 30, 32], dtype=jnp.int32)

    out = module(indices, offsets)
    out = jax.block_until_ready(out)

    ref = _reference(indices, offsets, module.tt_cores, module.p, module.q,
                     module.r, module.embedding_dim)
    # bf16 TT tables + bf16 matmul operands (f32 accumulation) vs f32 reference -> loose tolerance.
    np.testing.assert_allclose(np.asarray(out), np.asarray(ref), rtol=3e-2, atol=3e-3)
    assert out.shape == (offsets.shape[0] - 1, embedding_dim) and out.dtype == jnp.float32

    print("KERNEL_OK")
</pallas_src>

<mosaic_0001>
module attributes {stable_mosaic.version = 11 : i64} {
  func.func @_tt_bag_kernel(%arg0: i32, %arg1: i32, %arg2: memref<128x2xi32, #tpu.memory_space<vmem>>, %arg3: memref<1x128xi32, #tpu.memory_space<vmem>>, %arg4: memref<8x1024xbf16, #tpu.memory_space<any>>, %arg5: memref<32x256xbf16, #tpu.memory_space<any>>, %arg6: memref<1024x128xbf16, #tpu.memory_space<any>>, %arg7: memref<8x128xf32, #tpu.memory_space<vmem>>, %arg8: memref<8x1024xbf16, #tpu.memory_space<vmem>>, %arg9: memref<32x256xbf16, #tpu.memory_space<vmem>>, %arg10: memref<1024x128xbf16, #tpu.memory_space<vmem>>) attributes {dimension_semantics = [#tpu.dimension_semantics<parallel>, #tpu.dimension_semantics<arbitrary>], iteration_bounds = array<i64: 1, 1>, scalar_prefetch = 0 : i64, scratch_operands = 3 : i64, tpu.core_type = #tpu.core_type<tc>, window_params = [{transform_indices = @transform_0, window_bounds = array<i64: 128, 2>}, {transform_indices = @transform_1, window_bounds = array<i64: 1, 128>}, {}, {}, {}, {transform_indices = @transform_5, window_bounds = array<i64: 8, 128>}]} {
    %c0_i32 = arith.constant 0 : i32
    %0 = arith.cmpi eq, %arg1, %c0_i32 : i32
    %1 = arith.extui %0 : i1 to i32
    %c0_i32_0 = arith.constant 0 : i32
    %2 = arith.cmpi ne, %1, %c0_i32_0 : i32
    scf.if %2 {
      "tpu.region"() ({
        %40 = tpu.sem_alloc : memref<!tpu.dma_semaphore, #tpu.memory_space<semaphore_mem>>
        tpu.enqueue_dma source(%arg4 : memref<8x1024xbf16, #tpu.memory_space<any>>) target(%arg8 : memref<8x1024xbf16, #tpu.memory_space<vmem>>) target_semaphore(%40 : memref<!tpu.dma_semaphore, #tpu.memory_space<semaphore_mem>>)
        tpu.wait_dma2 semaphore(%40 : memref<!tpu.dma_semaphore, #tpu.memory_space<semaphore_mem>>) src(%arg4 : memref<8x1024xbf16, #tpu.memory_space<any>>) dst(%arg8 : memref<8x1024xbf16, #tpu.memory_space<vmem>>)
        tpu.yield
      }) : () -> ()
      "tpu.region"() ({
        %40 = tpu.sem_alloc : memref<!tpu.dma_semaphore, #tpu.memory_space<semaphore_mem>>
        tpu.enqueue_dma source(%arg5 : memref<32x256xbf16, #tpu.memory_space<any>>) target(%arg9 : memref<32x256xbf16, #tpu.memory_space<vmem>>) target_semaphore(%40 : memref<!tpu.dma_semaphore, #tpu.memory_space<semaphore_mem>>)
        tpu.wait_dma2 semaphore(%40 : memref<!tpu.dma_semaphore, #tpu.memory_space<semaphore_mem>>) src(%arg5 : memref<32x256xbf16, #tpu.memory_space<any>>) dst(%arg9 : memref<32x256xbf16, #tpu.memory_space<vmem>>)
        tpu.yield
      }) : () -> ()
      "tpu.region"() ({
        %40 = tpu.sem_alloc : memref<!tpu.dma_semaphore, #tpu.memory_space<semaphore_mem>>
        tpu.enqueue_dma source(%arg6 : memref<1024x128xbf16, #tpu.memory_space<any>>) target(%arg10 : memref<1024x128xbf16, #tpu.memory_space<vmem>>) target_semaphore(%40 : memref<!tpu.dma_semaphore, #tpu.memory_space<semaphore_mem>>)
        tpu.wait_dma2 semaphore(%40 : memref<!tpu.dma_semaphore, #tpu.memory_space<semaphore_mem>>) src(%arg6 : memref<1024x128xbf16, #tpu.memory_space<any>>) dst(%arg10 : memref<1024x128xbf16, #tpu.memory_space<vmem>>)
        tpu.yield
      }) : () -> ()
      %cst_18 = arith.constant 0.000000e+00 : f32
      %38 = vector.broadcast %cst_18 : f32 to vector<8x128xf32>
      %c0_19 = arith.constant 0 : index
      %c0_20 = arith.constant 0 : index
      %39 = vector.load %arg7[%c0_19, %c0_20] : memref<8x128xf32, #tpu.memory_space<vmem>>, vector<8x128xf32>
      tpu.vector_store %arg7[%c0_19, %c0_20], %38 {strides = array<i32>} : memref<8x128xf32, #tpu.memory_space<vmem>>, vector<8x128xf32>,
    } else {
    }
    %c0 = arith.constant 0 : index
    %c0_1 = arith.constant 0 : index
    %3 = vector.load %arg2[%c0, %c0_1] : memref<128x2xi32, #tpu.memory_space<vmem>>, vector<128x1xi32>
    %c0_2 = arith.constant 0 : index
    %c1 = arith.constant 1 : index
    %4 = vector.load %arg2[%c0_2, %c1] : memref<128x2xi32, #tpu.memory_space<vmem>>, vector<128x1xi32>
    %5 = tpu.iota {dimensions = array<i32: 1>} : vector<128x8xi32>
    %6 = vector.broadcast %3 : vector<128x1xi32> to vector<128x8xi32>
    %7 = arith.cmpi eq, %6, %5 : vector<128x8xi32>
    %8 = arith.extui %7 : vector<128x8xi1> to vector<128x8xi32>
    %9 = arith.sitofp %8 : vector<128x8xi32> to vector<128x8xf32>
    %10 = arith.truncf %9 : vector<128x8xf32> to vector<128x8xbf16>
    %11 = tpu.iota {dimensions = array<i32: 1>} : vector<128x32xi32>
    %12 = vector.broadcast %4 : vector<128x1xi32> to vector<128x32xi32>
    %13 = arith.cmpi eq, %12, %11 : vector<128x32xi32>
    %14 = arith.extui %13 : vector<128x32xi1> to vector<128x32xi32>
    %15 = arith.sitofp %14 : vector<128x32xi32> to vector<128x32xf32>
    %16 = arith.truncf %15 : vector<128x32xf32> to vector<128x32xbf16>
    %c0_3 = arith.constant 0 : index
    %c0_4 = arith.constant 0 : index
    %17 = vector.load %arg8[%c0_3, %c0_4] : memref<8x1024xbf16, #tpu.memory_space<vmem>>, vector<8x1024xbf16>
    %cst = arith.constant dense<0.000000e+00> : vector<128x1024xf32>
    %18 = tpu.matmul %10, %17, %cst {dimension_numbers = #tpu.dot_dimension_numbers<[1], [0], [0], [1], [0, 0, 1, 1], [], []>} : vector<128x8xbf16>, vector<8x1024xbf16>, vector<128x1024xf32> -> vector<128x1024xf32>
    %c0_5 = arith.constant 0 : index
    %c0_6 = arith.constant 0 : index
    %19 = vector.load %arg9[%c0_5, %c0_6] : memref<32x256xbf16, #tpu.memory_space<vmem>>, vector<32x256xbf16>
    %cst_7 = arith.constant dense<0.000000e+00> : vector<128x256xf32>
    %20 = tpu.matmul %16, %19, %cst_7 {dimension_numbers = #tpu.dot_dimension_numbers<[1], [0], [0], [1], [0, 0, 1, 1], [], []>} : vector<128x32xbf16>, vector<32x256xbf16>, vector<128x256xf32> -> vector<128x256xf32>
    %21 = tpu.concatenate %20, %20, %20, %20 in 1 : vector<128x256xf32>, vector<128x256xf32>, vector<128x256xf32>, vector<128x256xf32> -> vector<128x1024xf32>
    %22 = arith.mulf %18, %21 : vector<128x1024xf32>
    %23 = arith.truncf %22 : vector<128x1024xf32> to vector<128x1024xbf16>
    %c0_8 = arith.constant 0 : index
    %c0_9 = arith.constant 0 : index
    %24 = vector.load %arg10[%c0_8, %c0_9] : memref<1024x128xbf16, #tpu.memory_space<vmem>>, vector<1024x128xbf16>
    %cst_10 = arith.constant dense<0.000000e+00> : vector<128x128xf32>
    %25 = tpu.matmul %23, %24, %cst_10 {dimension_numbers = #tpu.dot_dimension_numbers<[1], [0], [0], [1], [0, 0, 1, 1], [], []>} : vector<128x1024xbf16>, vector<1024x128xbf16>, vector<128x128xf32> -> vector<128x128xf32>
    %26 = tpu.iota {dimensions = array<i32: 0>} : vector<8x128xi32>
    %c0_11 = arith.constant 0 : index
    %c0_12 = arith.constant 0 : index
    %27 = vector.load %arg3[%c0_11, %c0_12] : memref<1x128xi32, #tpu.memory_space<vmem>>, vector<1x128xi32>
    %28 = vector.broadcast %27 : vector<1x128xi32> to vector<8x128xi32>
    %29 = arith.cmpi eq, %26, %28 : vector<8x128xi32>
    %30 = arith.extui %29 : vector<8x128xi1> to vector<8x128xi32>
    %31 = arith.sitofp %30 : vector<8x128xi32> to vector<8x128xf32>
    %32 = arith.truncf %31 : vector<8x128xf32> to vector<8x128xbf16>
    %c0_13 = arith.constant 0 : index
    %c0_14 = arith.constant 0 : index
    %33 = vector.load %arg7[%c0_13, %c0_14] : memref<8x128xf32, #tpu.memory_space<vmem>>, vector<8x128xf32>
    %34 = arith.truncf %25 : vector<128x128xf32> to vector<128x128xbf16>
    %cst_15 = arith.constant dense<0.000000e+00> : vector<8x128xf32>
    %35 = tpu.matmul %32, %34, %cst_15 {dimension_numbers = #tpu.dot_dimension_numbers<[1], [0], [0], [1], [0, 0, 1, 1], [], []>} : vector<8x128xbf16>, vector<128x128xbf16>, vector<8x128xf32> -> vector<8x128xf32>
    %36 = arith.addf %33, %35 : vector<8x128xf32>
    %c0_16 = arith.constant 0 : index
    %c0_17 = arith.constant 0 : index
    %37 = vector.load %arg7[%c0_16, %c0_17] : memref<8x128xf32, #tpu.memory_space<vmem>>, vector<8x128xf32>
    tpu.vector_store %arg7[%c0_16, %c0_17], %36 {strides = array<i32>} : memref<8x128xf32, #tpu.memory_space<vmem>>, vector<8x128xf32>,
    return
  }
  func.func @transform_0(%arg0: i32, %arg1: i32) -> (i32, i32) {
    %c1_i32 = arith.constant 1 : i32
    %0 = arith.muli %arg0, %c1_i32 : i32
    %1 = arith.addi %0, %arg1 : i32
    %c0_i32 = arith.constant 0 : i32
    %c0_i32_0 = arith.constant 0 : i32
    return %1, %c0_i32 : i32, i32
  }
  func.func @transform_1(%arg0: i32, %arg1: i32) -> (i32, i32) {
    %c1_i32 = arith.constant 1 : i32
    %0 = arith.muli %arg0, %c1_i32 : i32
    %1 = arith.addi %0, %arg1 : i32
    %c0_i32 = arith.constant 0 : i32
    %c0_i32_0 = arith.constant 0 : i32
    return %c0_i32, %1 : i32, i32
  }
  func.func @transform_5(%arg0: i32, %arg1: i32) -> (i32, i32) {
    %c0_i32 = arith.constant 0 : i32
    %c0_i32_0 = arith.constant 0 : i32
    return %arg0, %c0_i32 : i32, i32
  }
}

</mosaic_0001>

<llo_original>
// kernel: custom-call
$region0: #{custom-call}
  %s0 = inlined_call_operand.vmem [shape: u32[32], index: 0, kind: output, shape index: {}]

// kernel: _tt_embedding_bag_fwd.1
$region0: #{_tt_embedding_bag_fwd.1}
  #allocation0 [shape = 'u32[]', space=smem, size = 0x4, offset = 0x4, fixed_abs, tag = 'smem constant byte address 0x4 - core index']
  #allocation1 [shape = 'u32[72,128]{1,0:T(1,128)}', space=vmem, size = 0x9000, scoped, tag = 'internal scratch']
  #allocation2 [shape = 'bf16[8,1024]{1,0:T(8,128)(2,1)}', space=vmem, size = 0x4000, scoped, tag = 'scratch operand']
  #allocation3 [shape = 'bf16[32,256]{1,0:T(8,128)(2,1)}', space=vmem, size = 0x4000, scoped, tag = 'scratch operand']
  #allocation4 [shape = 'bf16[1024,128]{1,0:T(8,128)(2,1)}', space=vmem, size = 0x40000, scoped, tag = 'scratch operand']
  #allocation8 [shape = 's32[]', space=sflag, size = 0x4, offset = 0, fixed_abs, tag = 'sflag constant byte address 0x0 - dummy sync flag']
  #allocation10 [shape = 's32[]', space=sflag, size = 0x4, offset = 0, fixed_abs, tag = 'sflag constant byte address 0x0 - dummy sync flag']
  #allocation12 [shape = 's32[]', space=sflag, size = 0x4, offset = 0, fixed_abs, tag = 'sflag constant byte address 0x0 - dummy sync flag']
  %s0 = inlined_call_operand.vmem [shape: s32[128,2], index: 0, kind: input, shape index: {}]
  %s1 = inlined_call_operand.vmem [shape: s32[1,128], index: 1, kind: input, shape index: {}]
  %s2 = inlined_call_operand.vmem [shape: bf16[8,1024], index: 2, kind: input, shape index: {}]
  %s3 = inlined_call_operand.vmem [shape: bf16[32,256], index: 3, kind: input, shape index: {}]
  %s4 = inlined_call_operand.vmem [shape: bf16[1024,128], index: 4, kind: input, shape index: {}]
  %s5 = inlined_call_operand.hbm [shape: f32[8,128], index: 5, kind: output, shape index: {}]
  %s6 = sld [smem:[#allocation0]]
  $region82: #{_tt_embedding_bag_fwd.1} parent=0
    _
  %s8 = ssub.s32 1, %s6
  %s9 = scalar_select 0, %s8, %s6
  $region1: #{_tt_embedding_bag_fwd.1} parent=0
    #allocation5 [shape = 'u8[4096]{0}', space=vmem, size = 0x1000, scoped, tag = 'output window, operand 0, single buffered']
    #allocation6 [shape = 's32[1]{0}', space=sflag, size = 0x4, scoped, tag = 'scoped memory for _tt_embedding_bag_fwd.1']
    %10 = vsyncpa [#allocation6], 0
    // Predicated region
    $region2: #{_tt_embedding_bag_fwd.1} parent=1 // pred_check
      _
    $region3: #{_tt_embedding_bag_fwd.1} parent=1 // pred_check_branch
      %12 = sbr.rel (0) target = $region5
    $region4: #{_tt_embedding_bag_fwd.1} parent=1 // pred_region
      %s13 = sadd.s32 0, 0
      %s14 = smul.u32 16, %s13
      %p15 = scmp.lt.s32.totalorder %s14, 15
      %s16 = scalar_select %p15, %s14, 15
      %s17 = smul.addr %s16, 8
      %s18 = scalar_lea.vmem %s0, %s17
      %s19 = sadd.s32 0, 0
      %s20 = smul.u32 16, %s19
    $region5: #{_tt_embedding_bag_fwd.1} parent=1 // pred_fallthru
      _
    // Predicated region
    $region6: #{_tt_embedding_bag_fwd.1} parent=1 // pred_check
      _
    $region7: #{_tt_embedding_bag_fwd.1} parent=1 // pred_check_branch
      %22 = sbr.rel (0) target = $region9
    $region8: #{_tt_embedding_bag_fwd.1} parent=1 // pred_region
      %s23 = sadd.s32 0, 0
      %p24 = scmp.lt.s32.totalorder %s23, 0
      %s25 = scalar_select %p24, %s23, 0
      %s26 = scalar_lea.vmem %s1, %s25
      %s27 = sadd.s32 0, 0
    $region9: #{_tt_embedding_bag_fwd.1} parent=1 // pred_fallthru
      _
    %s28 = sadd.s32 0, 0
    %s29 = smul.u32 16, %s28
    %p30 = scmp.lt.s32.totalorder %s29, 15
    %s31 = scalar_select %p30, %s29, 15
    %s32 = smul.addr %s31, 8
    %s33 = scalar_lea.vmem %s0, %s32
    %s34 = sadd.s32 0, 0
    %p35 = scmp.lt.s32.totalorder %s34, 0
    %s36 = scalar_select %p35, %s34, 0
    %s37 = scalar_lea.vmem %s1, %s36
    %s38 = sadd.s32 0, 0
    %s39 = smul.u32 16, %s38
    %p40 = scmp.lt.s32.totalorder %s39, 15
    %s41 = scalar_select %p40, %s39, 15
    %s42 = smul.addr %s41, 8
    %s43 = scalar_lea.vmem %s0, %s42
    %s44 = sadd.s32 0, 0
    %s45 = smul.u32 16, %s44
    %s46 = sadd.s32 0, 0
    %p47 = scmp.lt.s32.totalorder %s46, 0
    %s48 = scalar_select %p47, %s46, 0
    %s49 = scalar_lea.vmem %s1, %s48
    %s50 = sadd.s32 0, 0
    %p52 = scmp.eq.s32.totalorder 0, 0
    // Predicated region
    $region10: #{_tt_embedding_bag_fwd.1} parent=1 // pred_check
      %p53 = pneg %p52
    $region11: #{_tt_embedding_bag_fwd.1} parent=1 // pred_check_branch
      %55 = sbr.rel (%p53) target = $region13
    $region12: #{_tt_embedding_bag_fwd.1} parent=1 // pred_region
      $region14: #{_tt_embedding_bag_fwd.1} parent=12
        #allocation7 [shape = 's32[1]{0}', space=sflag, size = 0x4, scoped, tag = 'scoped memory for _tt_embedding_bag_fwd.1']
        // Predicated region
        $region15: #{_tt_embedding_bag_fwd.1} parent=14 // pred_check
          _
        $region16: #{_tt_embedding_bag_fwd.1} parent=14 // pred_check_branch
          %57 = sbr.rel (0) target = $region18
        $region17: #{_tt_embedding_bag_fwd.1} parent=14 // pred_region
          loop: start=0, step=1, limit=1
          $region19: #{_tt_embedding_bag_fwd.1} parent=17 // loop_pre_header
            _
          $region20: #{_tt_embedding_bag_fwd.1} parent=17 // loop_header
            %s59 = sphi 0, %s63
            %p60 = scmp.ge.s32.totalorder %s59, 1
            %s64 = sphi %s2, %s2
            %s65 = sphi [#allocation2], [#allocation2]
          $region21: #{_tt_embedding_bag_fwd.1} parent=17 // loop_header_branch
            %62 = sbr.rel (%p60) target = $region25
          $region22: #{_tt_embedding_bag_fwd.1} parent=17 // loop_body
            %v66 = vld [vmem:[%s64] sm:$0xff]
            %67 = vst [vmem:[%s65] sm:$0xff] %v66
            %v68 = vld [vmem:[%s64 + $0x8] sm:$0xff]
            %69 = vst [vmem:[%s65 + $0x8] sm:$0xff] %v68
            %v70 = vld [vmem:[%s64 + $0x10] sm:$0xff]
            %71 = vst [vmem:[%s65 + $0x10] sm:$0xff] %v70
            %v72 = vld [vmem:[%s64 + $0x18] sm:$0xff]
            %73 = vst [vmem:[%s65 + $0x18] sm:$0xff] %v72
          $region23: #{_tt_embedding_bag_fwd.1} parent=17 // loop_footer
            %s63 = sadd.s32 1, %s59
          $region24: #{_tt_embedding_bag_fwd.1} parent=17 // loop_footer_branch
            %58 = sbr.rel target = $region20
          $region25: #{_tt_embedding_bag_fwd.1} parent=17 // loop_exit
            _
        $region18: #{_tt_embedding_bag_fwd.1} parent=14 // pred_fallthru
          _
        // Predicated region
        $region26: #{_tt_embedding_bag_fwd.1} parent=14 // pred_check
          _
        $region27: #{_tt_embedding_bag_fwd.1} parent=14 // pred_check_branch
          %75 = sbr.rel target = $region29
        $region28: #{_tt_embedding_bag_fwd.1} parent=14 // pred_region
          _
        $region29: #{_tt_embedding_bag_fwd.1} parent=14 // pred_fallthru
          _
        // Predicated region
        $region30: #{_tt_embedding_bag_fwd.1} parent=14 // pred_check
          _
        $region31: #{_tt_embedding_bag_fwd.1} parent=14 // pred_check_branch
          %78 = sbr.rel (0) target = $region33
        $region32: #{_tt_embedding_bag_fwd.1} parent=14 // pred_region
          %79 = vsyncadd [#allocation7], 512
        $region33: #{_tt_embedding_bag_fwd.1} parent=14 // pred_fallthru
          _
        %s80 = smul.u32 4, 1
        %s81 = smul.u32 %s80, 8
        %s82 = sshll.u32 %s81, 4
        %83 = dma.done [#allocation7], %s82
      $region34: #{_tt_embedding_bag_fwd.1} parent=12
        #allocation9 [shape = 's32[1]{0}', space=sflag, size = 0x4, scoped, tag = 'scoped memory for _tt_embedding_bag_fwd.1']
        // Predicated region
        $region35: #{_tt_embedding_bag_fwd.1} parent=34 // pred_check
          _
        $region36: #{_tt_embedding_bag_fwd.1} parent=34 // pred_check_branch
          %85 = sbr.rel (0) target = $region38
        $region37: #{_tt_embedding_bag_fwd.1} parent=34 // pred_region
          loop: start=0, step=1, limit=1
          $region39: #{_tt_embedding_bag_fwd.1} parent=37 // loop_pre_header
            _
          $region40: #{_tt_embedding_bag_fwd.1} parent=37 // loop_header
            %s87 = sphi 0, %s91
            %p88 = scmp.ge.s32.totalorder %s87, 1
            %s92 = sphi %s3, %s3
            %s93 = sphi [#allocation3], [#allocation3]
          $region41: #{_tt_embedding_bag_fwd.1} parent=37 // loop_header_branch
            %90 = sbr.rel (%p88) target = $region45
          $region42: #{_tt_embedding_bag_fwd.1} parent=37 // loop_body
            %v94 = vld [vmem:[%s92] sm:$0xff]
            %95 = vst [vmem:[%s93] sm:$0xff] %v94
            %v96 = vld [vmem:[%s92 + $0x8] sm:$0xff]
            %97 = vst [vmem:[%s93 + $0x8] sm:$0xff] %v96
            %v98 = vld [vmem:[%s92 + $0x10] sm:$0xff]
            %99 = vst [vmem:[%s93 + $0x10] sm:$0xff] %v98
            %v100 = vld [vmem:[%s92 + $0x18] sm:$0xff]
            %101 = vst [vmem:[%s93 + $0x18] sm:$0xff] %v100
          $region43: #{_tt_embedding_bag_fwd.1} parent=37 // loop_footer
            %s91 = sadd.s32 1, %s87
          $region44: #{_tt_embedding_bag_fwd.1} parent=37 // loop_footer_branch
            %86 = sbr.rel target = $region40
          $region45: #{_tt_embedding_bag_fwd.1} parent=37 // loop_exit
            _
        $region38: #{_tt_embedding_bag_fwd.1} parent=34 // pred_fallthru
          _
        // Predicated region
        $region46: #{_tt_embedding_bag_fwd.1} parent=34 // pred_check
          _
        $region47: #{_tt_embedding_bag_fwd.1} parent=34 // pred_check_branch
          %103 = sbr.rel target = $region49
        $region48: #{_tt_embedding_bag_fwd.1} parent=34 // pred_region
          _
        $region49: #{_tt_embedding_bag_fwd.1} parent=34 // pred_fallthru
          _
        // Predicated region
        $region50: #{_tt_embedding_bag_fwd.1} parent=34 // pred_check
          _
        $region51: #{_tt_embedding_bag_fwd.1} parent=34 // pred_check_branch
          %106 = sbr.rel (0) target = $region53
        $region52: #{_tt_embedding_bag_fwd.1} parent=34 // pred_region
          %107 = vsyncadd [#allocation9], 512
        $region53: #{_tt_embedding_bag_fwd.1} parent=34 // pred_fallthru
          _
        %s108 = smul.u32 4, 4
        %s109 = smul.u32 %s108, 2
        %s110 = sshll.u32 %s109, 4
        %111 = dma.done [#allocation9], %s110
      $region54: #{_tt_embedding_bag_fwd.1} parent=12
        #allocation11 [shape = 's32[1]{0}', space=sflag, size = 0x4, scoped, tag = 'scoped memory for _tt_embedding_bag_fwd.1']
        // Predicated region
        $region55: #{_tt_embedding_bag_fwd.1} parent=54 // pred_check
          _
        $region56: #{_tt_embedding_bag_fwd.1} parent=54 // pred_check_branch
          %113 = sbr.rel (0) target = $region58
        $region57: #{_tt_embedding_bag_fwd.1} parent=54 // pred_region
          loop: start=0, step=1, limit=1
          $region59: #{_tt_embedding_bag_fwd.1} parent=57 // loop_pre_header
            _
          $region60: #{_tt_embedding_bag_fwd.1} parent=57 // loop_header
            %s115 = sphi 0, %s119
            %p116 = scmp.ge.s32.totalorder %s115, 1
            %s120 = sphi %s4, %s4
            %s121 = sphi [#allocation4], [#allocation4]
          $region61: #{_tt_embedding_bag_fwd.1} parent=57 // loop_header_branch
            %118 = sbr.rel (%p116) target = $region65
          $region62: #{_tt_embedding_bag_fwd.1} parent=57 // loop_body
            %v122 = vld [vmem:[%s120] sm:$0xff]
            %123 = vst [vmem:[%s121] sm:$0xff] %v122
            %v124 = vld [vmem:[%s120 + $0x8] sm:$0xff]
            %125 = vst [vmem:[%s121 + $0x8] sm:$0xff] %v124
            %v126 = vld [vmem:[%s120 + $0x10] sm:$0xff]
            %127 = vst [vmem:[%s121 + $0x10] sm:$0xff] %v126
            %v128 = vld [vmem:[%s120 + $0x18] sm:$0xff]
            %129 = vst [vmem:[%s121 + $0x18] sm:$0xff] %v128
            %v130 = vld [vmem:[%s120 + $0x20] sm:$0xff]
            %131 = vst [vmem:[%s121 + $0x20] sm:$0xff] %v130
            %v132 = vld [vmem:[%s120 + $0x28] sm:$0xff]
            %133 = vst [vmem:[%s121 + $0x28] sm:$0xff] %v132
            %v134 = vld [vmem:[%s120 + $0x30] sm:$0xff]
            %135 = vst [vmem:[%s121 + $0x30] sm:$0xff] %v134
            %v136 = vld [vmem:[%s120 + $0x38] sm:$0xff]
            %137 = vst [vmem:[%s121 + $0x38] sm:$0xff] %v136
            %v138 = vld [vmem:[%s120 + $0x40] sm:$0xff]
            %139 = vst [vmem:[%s121 + $0x40] sm:$0xff] %v138
            %v140 = vld [vmem:[%s120 + $0x48] sm:$0xff]
            %141 = vst [vmem:[%s121 + $0x48] sm:$0xff] %v140
            %v142 = vld [vmem:[%s120 + $0x50] sm:$0xff]
            %143 = vst [vmem:[%s121 + $0x50] sm:$0xff] %v142
            %v144 = vld [vmem:[%s120 + $0x58] sm:$0xff]
            %145 = vst [vmem:[%s121 + $0x58] sm:$0xff] %v144
            %v146 = vld [vmem:[%s120 + $0x60] sm:$0xff]
            %147 = vst [vmem:[%s121 + $0x60] sm:$0xff] %v146
            %v148 = vld [vmem:[%s120 + $0x68] sm:$0xff]
            %149 = vst [vmem:[%s121 + $0x68] sm:$0xff] %v148
            %v150 = vld [vmem:[%s120 + $0x70] sm:$0xff]
            %151 = vst [vmem:[%s121 + $0x70] sm:$0xff] %v150
            %v152 = vld [vmem:[%s120 + $0x78] sm:$0xff]
            %153 = vst [vmem:[%s121 + $0x78] sm:$0xff] %v152
            %v154 = vld [vmem:[%s120 + $0x80] sm:$0xff]
            %155 = vst [vmem:[%s121 + $0x80] sm:$0xff] %v154
            %v156 = vld [vmem:[%s120 + $0x88] sm:$0xff]
            %157 = vst [vmem:[%s121 + $0x88] sm:$0xff] %v156
            %v158 = vld [vmem:[%s120 + $0x90] sm:$0xff]
            %159 = vst [vmem:[%s121 + $0x90] sm:$0xff] %v158
            %v160 = vld [vmem:[%s120 + $0x98] sm:$0xff]
            %161 = vst [vmem:[%s121 + $0x98] sm:$0xff] %v160
            %v162 = vld [vmem:[%s120 + $0xa0] sm:$0xff]
            %163 = vst [vmem:[%s121 + $0xa0] sm:$0xff] %v162
            %v164 = vld [vmem:[%s120 + $0xa8] sm:$0xff]
            %165 = vst [vmem:[%s121 + $0xa8] sm:$0xff] %v164
            %v166 = vld [vmem:[%s120 + $0xb0] sm:$0xff]
            %167 = vst [vmem:[%s121 + $0xb0] sm:$0xff] %v166
            %v168 = vld [vmem:[%s120 + $0xb8] sm:$0xff]
            %169 = vst [vmem:[%s121 + $0xb8] sm:$0xff] %v168
            %v170 = vld [vmem:[%s120 + $0xc0] sm:$0xff]
            %171 = vst [vmem:[%s121 + $0xc0] sm:$0xff] %v170
            %v172 = vld [vmem:[%s120 + $0xc8] sm:$0xff]
            %173 = vst [vmem:[%s121 + $0xc8] sm:$0xff] %v172
            %v174 = vld [vmem:[%s120 + $0xd0] sm:$0xff]
            %175 = vst [vmem:[%s121 + $0xd0] sm:$0xff] %v174
            %v176 = vld [vmem:[%s120 + $0xd8] sm:$0xff]
            %177 = vst [vmem:[%s121 + $0xd8] sm:$0xff] %v176
            %v178 = vld [vmem:[%s120 + $0xe0] sm:$0xff]
            %179 = vst [vmem:[%s121 + $0xe0] sm:$0xff] %v178
            %v180 = vld [vmem:[%s120 + $0xe8] sm:$0xff]
            %181 = vst [vmem:[%s121 + $0xe8] sm:$0xff] %v180
            %v182 = vld [vmem:[%s120 + $0xf0] sm:$0xff]
            %183 = vst [vmem:[%s121 + $0xf0] sm:$0xff] %v182
            %v184 = vld [vmem:[%s120 + $0xf8] sm:$0xff]
            %185 = vst [vmem:[%s121 + $0xf8] sm:$0xff] %v184
            %v186 = vld [vmem:[%s120 + $0x100] sm:$0xff]
            %187 = vst [vmem:[%s121 + $0x100] sm:$0xff] %v186
            %v188 = vld [vmem:[%s120 + $0x108] sm:$0xff]
            %189 = vst [vmem:[%s121 + $0x108] sm:$0xff] %v188
            %v190 = vld [vmem:[%s120 + $0x110] sm:$0xff]
            %191 = vst [vmem:[%s121 + $0x110] sm:$0xff] %v190
            %v192 = vld [vmem:[%s120 + $0x118] sm:$0xff]
            %193 = vst [vmem:[%s121 + $0x118] sm:$0xff] %v192
            %v194 = vld [vmem:[%s120 + $0x120] sm:$0xff]
            %195 = vst [vmem:[%s121 + $0x120] sm:$0xff] %v194
            %v196 = vld [vmem:[%s120 + $0x128] sm:$0xff]
            %197 = vst [vmem:[%s121 + $0x128] sm:$0xff] %v196
            %v198 = vld [vmem:[%s120 + $0x130] sm:$0xff]
            %199 = vst [vmem:[%s121 + $0x130] sm:$0xff] %v198
            %v200 = vld [vmem:[%s120 + $0x138] sm:$0xff]
            %201 = vst [vmem:[%s121 + $0x138] sm:$0xff] %v200
            %v202 = vld [vmem:[%s120 + $0x140] sm:$0xff]
            %203 = vst [vmem:[%s121 + $0x140] sm:$0xff] %v202
            %v204 = vld [vmem:[%s120 + $0x148] sm:$0xff]
            %205 = vst [vmem:[%s121 + $0x148] sm:$0xff] %v204
            %v206 = vld [vmem:[%s120 + $0x150] sm:$0xff]
            %207 = vst [vmem:[%s121 + $0x150] sm:$0xff] %v206
            %v208 = vld [vmem:[%s120 + $0x158] sm:$0xff]
            %209 = vst [vmem:[%s121 + $0x158] sm:$0xff] %v208
            %v210 = vld [vmem:[%s120 + $0x160] sm:$0xff]
            %211 = vst [vmem:[%s121 + $0x160] sm:$0xff] %v210
            %v212 = vld [vmem:[%s120 + $0x168] sm:$0xff]
            %213 = vst [vmem:[%s121 + $0x168] sm:$0xff] %v212
            %v214 = vld [vmem:[%s120 + $0x170] sm:$0xff]
            %215 = vst [vmem:[%s121 + $0x170] sm:$0xff] %v214
            %v216 = vld [vmem:[%s120 + $0x178] sm:$0xff]
            %217 = vst [vmem:[%s121 + $0x178] sm:$0xff] %v216
            %v218 = vld [vmem:[%s120 + $0x180] sm:$0xff]
            %219 = vst [vmem:[%s121 + $0x180] sm:$0xff] %v218
            %v220 = vld [vmem:[%s120 + $0x188] sm:$0xff]
            %221 = vst [vmem:[%s121 + $0x188] sm:$0xff] %v220
            %v222 = vld [vmem:[%s120 + $0x190] sm:$0xff]
            %223 = vst [vmem:[%s121 + $0x190] sm:$0xff] %v222
            %v224 = vld [vmem:[%s120 + $0x198] sm:$0xff]
            %225 = vst [vmem:[%s121 + $0x198] sm:$0xff] %v224
            %v226 = vld [vmem:[%s120 + $0x1a0] sm:$0xff]
            %227 = vst [vmem:[%s121 + $0x1a0] sm:$0xff] %v226
            %v228 = vld [vmem:[%s120 + $0x1a8] sm:$0xff]
            %229 = vst [vmem:[%s121 + $0x1a8] sm:$0xff] %v228
            %v230 = vld [vmem:[%s120 + $0x1b0] sm:$0xff]
            %231 = vst [vmem:[%s121 + $0x1b0] sm:$0xff] %v230
            %v232 = vld [vmem:[%s120 + $0x1b8] sm:$0xff]
            %233 = vst [vmem:[%s121 + $0x1b8] sm:$0xff] %v232
            %v234 = vld [vmem:[%s120 + $0x1c0] sm:$0xff]
            %235 = vst [vmem:[%s121 + $0x1c0] sm:$0xff] %v234
            %v236 = vld [vmem:[%s120 + $0x1c8] sm:$0xff]
            %237 = vst [vmem:[%s121 + $0x1c8] sm:$0xff] %v236
            %v238 = vld [vmem:[%s120 + $0x1d0] sm:$0xff]
            %239 = vst [vmem:[%s121 + $0x1d0] sm:$0xff] %v238
            %v240 = vld [vmem:[%s120 + $0x1d8] sm:$0xff]
            %241 = vst [vmem:[%s121 + $0x1d8] sm:$0xff] %v240
            %v242 = vld [vmem:[%s120 + $0x1e0] sm:$0xff]
            %243 = vst [vmem:[%s121 + $0x1e0] sm:$0xff] %v242
            %v244 = vld [vmem:[%s120 + $0x1e8] sm:$0xff]
            %245 = vst [vmem:[%s121 + $0x1e8] sm:$0xff] %v244
            %v246 = vld [vmem:[%s120 + $0x1f0] sm:$0xff]
            %247 = vst [vmem:[%s121 + $0x1f0] sm:$0xff] %v246
            %v248 = vld [vmem:[%s120 + $0x1f8] sm:$0xff]
            %249 = vst [vmem:[%s121 + $0x1f8] sm:$0xff] %v248
          $region63: #{_tt_embedding_bag_fwd.1} parent=57 // loop_footer
            %s119 = sadd.s32 1, %s115
          $region64: #{_tt_embedding_bag_fwd.1} parent=57 // loop_footer_branch
            %114 = sbr.rel target = $region60
          $region65: #{_tt_embedding_bag_fwd.1} parent=57 // loop_exit
            _
        $region58: #{_tt_embedding_bag_fwd.1} parent=54 // pred_fallthru
          _
        // Predicated region
        $region66: #{_tt_embedding_bag_fwd.1} parent=54 // pred_check
          _
        $region67: #{_tt_embedding_bag_fwd.1} parent=54 // pred_check_branch
          %251 = sbr.rel target = $region69
        $region68: #{_tt_embedding_bag_fwd.1} parent=54 // pred_region
          _
        $region69: #{_tt_embedding_bag_fwd.1} parent=54 // pred_fallthru
          _
        // Predicated region
        $region70: #{_tt_embedding_bag_fwd.1} parent=54 // pred_check
          _
        $region71: #{_tt_embedding_bag_fwd.1} parent=54 // pred_check_branch
          %254 = sbr.rel (0) target = $region73
        $region72: #{_tt_embedding_bag_fwd.1} parent=54 // pred_region
          %255 = vsyncadd [#allocation11], 8192
        $region73: #{_tt_embedding_bag_fwd.1} parent=54 // pred_fallthru
          _
        %s256 = smul.u32 4, 128
        %s257 = smul.u32 %s256, 1
        %s258 = sshll.u32 %s257, 4
        %259 = dma.done [#allocation11], %s258
      %260 = vst [vmem:[#allocation5] sm:$0xff] 0.0
    $region13: #{_tt_embedding_bag_fwd.1} parent=1 // pred_fallthru
      _
    %v261 = vld [vmem:[%s43] sm:$0xff]
    %v262 = vld [vmem:[%s43 + $0x8] sm:$0xff]
    %v263 = vld [vmem:[%s43 + $0x10] sm:$0xff]
    %v264 = vld [vmem:[%s43 + $0x18] sm:$0xff]
    %v265 = vld [vmem:[%s43 + $0x20] sm:$0xff]
    %v266 = vld [vmem:[%s43 + $0x28] sm:$0xff]
    %v267 = vld [vmem:[%s43 + $0x30] sm:$0xff]
    %v268 = vld [vmem:[%s43 + $0x38] sm:$0xff]
    %v269 = vld [vmem:[%s43 + $0x40] sm:$0xff]
    %v270 = vld [vmem:[%s43 + $0x48] sm:$0xff]
    %v271 = vld [vmem:[%s43 + $0x50] sm:$0xff]
    %v272 = vld [vmem:[%s43 + $0x58] sm:$0xff]
    %v273 = vld [vmem:[%s43 + $0x60] sm:$0xff]
    %v274 = vld [vmem:[%s43 + $0x68] sm:$0xff]
    %v275 = vld [vmem:[%s43 + $0x70] sm:$0xff]
    %v276 = vld [vmem:[%s43 + $0x78] sm:$0xff]
    %v277 = vlaneseq
    %v278 = vand.u32 %v277, 127
    %279 = vset.pattern.permute.xlu0 0
    %280 = vperm.xlu0 %279, %v261
    %v281 = vpop.permute.xlu0 %280
    %282 = vset.pattern.permute.xlu0 0
    %283 = vperm.xlu0 %282, %v262
    %v284 = vpop.permute.xlu0 %283
    %285 = vset.pattern.permute.xlu0 0
    %286 = vperm.xlu0 %285, %v263
    %v287 = vpop.permute.xlu0 %286
    %288 = vset.pattern.permute.xlu0 0
    %289 = vperm.xlu0 %288, %v264
    %v290 = vpop.permute.xlu0 %289
    %291 = vset.pattern.permute.xlu0 0
    %292 = vperm.xlu0 %291, %v265
    %v293 = vpop.permute.xlu0 %292
    %294 = vset.pattern.permute.xlu0 0
    %295 = vperm.xlu0 %294, %v266
    %v296 = vpop.permute.xlu0 %295
    %297 = vset.pattern.permute.xlu0 0
    %298 = vperm.xlu0 %297, %v267
    %v299 = vpop.permute.xlu0 %298
    %300 = vset.pattern.permute.xlu0 0
    %301 = vperm.xlu0 %300, %v268
    %v302 = vpop.permute.xlu0 %301
    %303 = vset.pattern.permute.xlu0 0
    %304 = vperm.xlu0 %303, %v269
    %v305 = vpop.permute.xlu0 %304
    %306 = vset.pattern.permute.xlu0 0
    %307 = vperm.xlu0 %306, %v270
    %v308 = vpop.permute.xlu0 %307
    %309 = vset.pattern.permute.xlu0 0
    %310 = vperm.xlu0 %309, %v271
    %v311 = vpop.permute.xlu0 %310
    %312 = vset.pattern.permute.xlu0 0
    %313 = vperm.xlu0 %312, %v272
    %v314 = vpop.permute.xlu0 %313
    %315 = vset.pattern.permute.xlu0 0
    %316 = vperm.xlu0 %315, %v273
    %v317 = vpop.permute.xlu0 %316
    %318 = vset.pattern.permute.xlu0 0
    %319 = vperm.xlu0 %318, %v274
    %v320 = vpop.permute.xlu0 %319
    %321 = vset.pattern.permute.xlu0 0
    %322 = vperm.xlu0 %321, %v275
    %v323 = vpop.permute.xlu0 %322
    %324 = vset.pattern.permute.xlu0 0
    %325 = vperm.xlu0 %324, %v276
    %v326 = vpop.permute.xlu0 %325
    %vm327 = vcmp.eq.s32.totalorder %v281, %v278
    %vm328 = vcmp.eq.s32.totalorder %v284, %v278
    %vm329 = vcmp.eq.s32.totalorder %v287, %v278
    %vm330 = vcmp.eq.s32.totalorder %v290, %v278
    %vm331 = vcmp.eq.s32.totalorder %v293, %v278
    %vm332 = vcmp.eq.s32.totalorder %v296, %v278
    %vm333 = vcmp.eq.s32.totalorder %v299, %v278
    %vm334 = vcmp.eq.s32.totalorder %v302, %v278
    %vm335 = vcmp.eq.s32.totalorder %v305, %v278
    %vm336 = vcmp.eq.s32.totalorder %v308, %v278
    %vm337 = vcmp.eq.s32.totalorder %v311, %v278
    %vm338 = vcmp.eq.s32.totalorder %v314, %v278
    %vm339 = vcmp.eq.s32.totalorder %v317, %v278
    %vm340 = vcmp.eq.s32.totalorder %v320, %v278
    %vm341 = vcmp.eq.s32.totalorder %v323, %v278
    %vm342 = vcmp.eq.s32.totalorder %v326, %v278
    %v343 = vsel %vm327, 1, 0
    %v344 = vsel %vm328, 1, 0
    %v345 = vsel %vm329, 1, 0
    %v346 = vsel %vm330, 1, 0
    %v347 = vsel %vm331, 1, 0
    %v348 = vsel %vm332, 1, 0
    %v349 = vsel %vm333, 1, 0
    %v350 = vsel %vm334, 1, 0
    %v351 = vsel %vm335, 1, 0
    %v352 = vsel %vm336, 1, 0
    %v353 = vsel %vm337, 1, 0
    %v354 = vsel %vm338, 1, 0
    %v355 = vsel %vm339, 1, 0
    %v356 = vsel %vm340, 1, 0
    %v357 = vsel %vm341, 1, 0
    %v358 = vsel %vm342, 1, 0
    %v359 = vcvt.s32.f32 %v343
    %v360 = vcvt.s32.f32 %v344
    %v361 = vcvt.s32.f32 %v345
    %v362 = vcvt.s32.f32 %v346
    %v363 = vcvt.s32.f32 %v347
    %v364 = vcvt.s32.f32 %v348
    %v365 = vcvt.s32.f32 %v349
    %v366 = vcvt.s32.f32 %v350
    %v367 = vcvt.s32.f32 %v351
    %v368 = vcvt.s32.f32 %v352
    %v369 = vcvt.s32.f32 %v353
    %v370 = vcvt.s32.f32 %v354
    %v371 = vcvt.s32.f32 %v355
    %v372 = vcvt.s32.f32 %v356
    %v373 = vcvt.s32.f32 %v357
    %v374 = vcvt.s32.f32 %v358
    %v375 = vpack.c.bf16 %v360, %v359
    %v376 = vpack.c.bf16 %v362, %v361
    %v377 = vpack.c.bf16 %v364, %v363
    %v378 = vpack.c.bf16 %v366, %v365
    %v379 = vpack.c.bf16 %v368, %v367
    %v380 = vpack.c.bf16 %v370, %v369
    %v381 = vpack.c.bf16 %v372, %v371
    %v382 = vpack.c.bf16 %v374, %v373
    %383 = vset.pattern.permute.xlu0 1
    %384 = vperm.xlu0 %383, %v261
    %v385 = vpop.permute.xlu0 %384
    %386 = vset.pattern.permute.xlu0 1
    %387 = vperm.xlu0 %386, %v262
    %v388 = vpop.permute.xlu0 %387
    %389 = vset.pattern.permute.xlu0 1
    %390 = vperm.xlu0 %389, %v263
    %v391 = vpop.permute.xlu0 %390
    %392 = vset.pattern.permute.xlu0 1
    %393 = vperm.xlu0 %392, %v264
    %v394 = vpop.permute.xlu0 %393
    %395 = vset.pattern.permute.xlu0 1
    %396 = vperm.xlu0 %395, %v265
    %v397 = vpop.permute.xlu0 %396
    %398 = vset.pattern.permute.xlu0 1
    %399 = vperm.xlu0 %398, %v266
    %v400 = vpop.permute.xlu0 %399
    %401 = vset.pattern.permute.xlu0 1
    %402 = vperm.xlu0 %401, %v267
    %v403 = vpop.permute.xlu0 %402
    %404 = vset.pattern.permute.xlu0 1
    %405 = vperm.xlu0 %404, %v268
    %v406 = vpop.permute.xlu0 %405
    %407 = vset.pattern.permute.xlu0 1
    %408 = vperm.xlu0 %407, %v269
    %v409 = vpop.permute.xlu0 %408
    %410 = vset.pattern.permute.xlu0 1
    %411 = vperm.xlu0 %410, %v270
    %v412 = vpop.permute.xlu0 %411
    %413 = vset.pattern.permute.xlu0 1
    %414 = vperm.xlu0 %413, %v271
    %v415 = vpop.permute.xlu0 %414
    %416 = vset.pattern.permute.xlu0 1
    %417 = vperm.xlu0 %416, %v272
    %v418 = vpop.permute.xlu0 %417
    %419 = vset.pattern.permute.xlu0 1
    %420 = vperm.xlu0 %419, %v273
    %v421 = vpop.permute.xlu0 %420
    %422 = vset.pattern.permute.xlu0 1
    %423 = vperm.xlu0 %422, %v274
    %v424 = vpop.permute.xlu0 %423
    %425 = vset.pattern.permute.xlu0 1
    %426 = vperm.xlu0 %425, %v275
    %v427 = vpop.permute.xlu0 %426
    %428 = vset.pattern.permute.xlu0 1
    %429 = vperm.xlu0 %428, %v276
    %v430 = vpop.permute.xlu0 %429
    %vm431 = vcmp.eq.s32.totalorder %v385, %v278
    %vm432 = vcmp.eq.s32.totalorder %v388, %v278
    %vm433 = vcmp.eq.s32.totalorder %v391, %v278
    %vm434 = vcmp.eq.s32.totalorder %v394, %v278
    %vm435 = vcmp.eq.s32.totalorder %v397, %v278
    %vm436 = vcmp.eq.s32.totalorder %v400, %v278
    %vm437 = vcmp.eq.s32.totalorder %v403, %v278
    %vm438 = vcmp.eq.s32.totalorder %v406, %v278
    %vm439 = vcmp.eq.s32.totalorder %v409, %v278
    %vm440 = vcmp.eq.s32.totalorder %v412, %v278
    %vm441 = vcmp.eq.s32.totalorder %v415, %v278
    %vm442 = vcmp.eq.s32.totalorder %v418, %v278
    %vm443 = vcmp.eq.s32.totalorder %v421, %v278
    %vm444 = vcmp.eq.s32.totalorder %v424, %v278
    %vm445 = vcmp.eq.s32.totalorder %v427, %v278
    %vm446 = vcmp.eq.s32.totalorder %v430, %v278
    %v447 = vsel %vm431, 1, 0
    %v448 = vsel %vm432, 1, 0
    %v449 = vsel %vm433, 1, 0
    %v450 = vsel %vm434, 1, 0
    %v451 = vsel %vm435, 1, 0
    %v452 = vsel %vm436, 1, 0
    %v453 = vsel %vm437, 1, 0
    %v454 = vsel %vm438, 1, 0
    %v455 = vsel %vm439, 1, 0
    %v456 = vsel %vm440, 1, 0
    %v457 = vsel %vm441, 1, 0
    %v458 = vsel %vm442, 1, 0
    %v459 = vsel %vm443, 1, 0
    %v460 = vsel %vm444, 1, 0
    %v461 = vsel %vm445, 1, 0
    %v462 = vsel %vm446, 1, 0
    %v463 = vcvt.s32.f32 %v447
    %v464 = vcvt.s32.f32 %v448
    %v465 = vcvt.s32.f32 %v449
    %v466 = vcvt.s32.f32 %v450
    %v467 = vcvt.s32.f32 %v451
    %v468 = vcvt.s32.f32 %v452
    %v469 = vcvt.s32.f32 %v453
    %v470 = vcvt.s32.f32 %v454
    %v471 = vcvt.s32.f32 %v455
    %v472 = vcvt.s32.f32 %v456
    %v473 = vcvt.s32.f32 %v457
    %v474 = vcvt.s32.f32 %v458
    %v475 = vcvt.s32.f32 %v459
    %v476 = vcvt.s32.f32 %v460
    %v477 = vcvt.s32.f32 %v461
    %v478 = vcvt.s32.f32 %v462
    %v479 = vpack.c.bf16 %v464, %v463
    %v480 = vpack.c.bf16 %v466, %v465
    %v481 = vpack.c.bf16 %v468, %v467
    %v482 = vpack.c.bf16 %v470, %v469
    %v483 = vpack.c.bf16 %v472, %v471
    %v484 = vpack.c.bf16 %v474, %v473
    %v485 = vpack.c.bf16 %v476, %v475
    %v486 = vpack.c.bf16 %v478, %v477
    %v487 = vld [vmem:[#allocation2] sm:$0xff]
    %v488 = vld [vmem:[#allocation2 + $0x8] sm:$0xff]
    %v489 = vld [vmem:[#allocation2 + $0x10] sm:$0xff]
    %v490 = vld [vmem:[#allocation2 + $0x18] sm:$0xff]
    %v495 = vunpack.c.l.b16 %v487
    %v496 = vunpack.c.h.b16 %v487
    %v497 = vunpack.c.l.b16 %v488
    %v498 = vunpack.c.h.b16 %v488
    %v499 = vunpack.c.l.b16 %v489
    %v500 = vunpack.c.h.b16 %v489
    %v501 = vunpack.c.l.b16 %v490
    %v502 = vunpack.c.h.b16 %v490
    %v503 = vpack.c.b16 %v495, %v495
    %v504 = vpack.c.b16 %v496, %v496
    %v505 = vpack.c.b16 %v497, %v497
    %v506 = vpack.c.b16 %v498, %v498
    %v507 = vpack.c.b16 %v499, %v499
    %v508 = vpack.c.b16 %v500, %v500
    %v509 = vpack.c.b16 %v501, %v501
    %v510 = vpack.c.b16 %v502, %v502
    %vm511 = vcmask 64512
    %v513 = vsel %vm511, %v375, 0
    %v516 = vsel %vm511, %v376, 0
    %v519 = vsel %vm511, %v377, 0
    %v522 = vsel %vm511, %v378, 0
    %v525 = vsel %vm511, %v379, 0
    %v528 = vsel %vm511, %v380, 0
    %v531 = vsel %vm511, %v381, 0
    %v534 = vsel %vm511, %v382, 0
    %vm536 = vcmask 1043456
    %v538 = vsel %vm536, %v503, 0
    %v541 = vsel %vm536, %v504, 0
    %v544 = vsel %vm536, %v505, 0
    %v547 = vsel %vm536, %v506, 0
    %v550 = vsel %vm536, %v507, 0
    %v553 = vsel %vm536, %v508, 0
    %v556 = vsel %vm536, %v509, 0
    %v559 = vsel %vm536, %v510, 0
    %561 = vmatpush.bf16.msra.mxu0 0
    %562 = vmatpush.bf16.msra.mxu0 0
    %563 = vmatpush.bf16.msra.mxu0 0
    %564 = vmatpush.bf16.msra.mxu0 0
    %565 = vmatpush.bf16.msra.mxu0 0
    %566 = vmatpush.bf16.msra.mxu0 0
    %567 = vmatpush.bf16.msra.mxu0 0
    %568 = vmatpush.bf16.msra.mxu0 %v538
    %569 = vmatmul.bf16.gmra.mxu0 %v513
    %v570 = vpop.f32.mrf.mxu0
    %v571 = vadd.f32 0.0, %v570
    %v572 = vpop.f32.mrf.mxu0
    %v573 = vadd.f32 0.0, %v572
    %574 = vmatmul.bf16.gmra.mxu0 %v516
    %v575 = vpop.f32.mrf.mxu0
    %v576 = vadd.f32 0.0, %v575
    %v577 = vpop.f32.mrf.mxu0
    %v578 = vadd.f32 0.0, %v577
    %579 = vmatmul.bf16.gmra.mxu0 %v519
    %v580 = vpop.f32.mrf.mxu0
    %v581 = vadd.f32 0.0, %v580
    %v582 = vpop.f32.mrf.mxu0
    %v583 = vadd.f32 0.0, %v582
    %584 = vmatmul.bf16.gmra.mxu0 %v522
    %v585 = vpop.f32.mrf.mxu0
    %v586 = vadd.f32 0.0, %v585
    %v587 = vpop.f32.mrf.mxu0
    %v588 = vadd.f32 0.0, %v587
    %589 = vmatmul.bf16.gmra.mxu0 %v525
    %v590 = vpop.f32.mrf.mxu0
    %v591 = vadd.f32 0.0, %v590
    %v592 = vpop.f32.mrf.mxu0
    %v593 = vadd.f32 0.0, %v592
    %594 = vmatmul.bf16.gmra.mxu0 %v528
    %v595 = vpop.f32.mrf.mxu0
    %v596 = vadd.f32 0.0, %v595
    %v597 = vpop.f32.mrf.mxu0
    %v598 = vadd.f32 0.0, %v597
    %599 = vmatmul.bf16.gmra.mxu0 %v531
    %v600 = vpop.f32.mrf.mxu0
    %v601 = vadd.f32 0.0, %v600
    %v602 = vpop.f32.mrf.mxu0
    %v603 = vadd.f32 0.0, %v602
    %604 = vmatmul.bf16.gmra.mxu0 %v534
    %v605 = vpop.f32.mrf.mxu0
    %v606 = vadd.f32 0.0, %v605
    %v607 = vpop.f32.mrf.mxu0
    %v608 = vadd.f32 0.0, %v607
    %609 = vdwg.mxu0
    %610 = vmatpush.bf16.msra.mxu0 0
    %611 = vmatpush.bf16.msra.mxu0 0
    %612 = vmatpush.bf16.msra.mxu0 0
    %613 = vmatpush.bf16.msra.mxu0 0
    %614 = vmatpush.bf16.msra.mxu0 0
    %615 = vmatpush.bf16.msra.mxu0 0
    %616 = vmatpush.bf16.msra.mxu0 0
    %617 = vmatpush.bf16.msra.mxu0 %v541
    %618 = vmatmul.bf16.gmra.mxu0 %v513
    %v619 = vpop.f32.mrf.mxu0
    %v620 = vadd.f32 0.0, %v619
    %v621 = vpop.f32.mrf.mxu0
    %v622 = vadd.f32 0.0, %v621
    %623 = vmatmul.bf16.gmra.mxu0 %v516
    %v624 = vpop.f32.mrf.mxu0
    %v625 = vadd.f32 0.0, %v624
    %v626 = vpop.f32.mrf.mxu0
    %v627 = vadd.f32 0.0, %v626
    %628 = vmatmul.bf16.gmra.mxu0 %v519
    %v629 = vpop.f32.mrf.mxu0
    %v630 = vadd.f32 0.0, %v629
    %v631 = vpop.f32.mrf.mxu0
    %v632 = vadd.f32 0.0, %v631
    %633 = vmatmul.bf16.gmra.mxu0 %v522
    %v634 = vpop.f32.mrf.mxu0
    %v635 = vadd.f32 0.0, %v634
    %v636 = vpop.f32.mrf.mxu0
    %v637 = vadd.f32 0.0, %v636
    %638 = vmatmul.bf16.gmra.mxu0 %v525
    %v639 = vpop.f32.mrf.mxu0
    %v640 = vadd.f32 0.0, %v639
    %v641 = vpop.f32.mrf.mxu0
    %v642 = vadd.f32 0.0, %v641
    %643 = vmatmul.bf16.gmra.mxu0 %v528
    %v644 = vpop.f32.mrf.mxu0
    %v645 = vadd.f32 0.0, %v644
    %v646 = vpop.f32.mrf.mxu0
    %v647 = vadd.f32 0.0, %v646
    %648 = vmatmul.bf16.gmra.mxu0 %v531
    %v649 = vpop.f32.mrf.mxu0
    %v650 = vadd.f32 0.0, %v649
    %v651 = vpop.f32.mrf.mxu0
    %v652 = vadd.f32 0.0, %v651
    %653 = vmatmul.bf16.gmra.mxu0 %v534
    %v654 = vpop.f32.mrf.mxu0
    %v655 = vadd.f32 0.0, %v654
    %v656 = vpop.f32.mrf.mxu0
    %v657 = vadd.f32 0.0, %v656
    %658 = vdwg.mxu0
    %659 = vmatpush.bf16.msra.mxu0 0
    %660 = vmatpush.bf16.msra.mxu0 0
    %661 = vmatpush.bf16.msra.mxu0 0
    %662 = vmatpush.bf16.msra.mxu0 0
    %663 = vmatpush.bf16.msra.mxu0 0
    %664 = vmatpush.bf16.msra.mxu0 0
    %665 = vmatpush.bf16.msra.mxu0 0
    %666 = vmatpush.bf16.msra.mxu0 %v544
    %667 = vmatmul.bf16.gmra.mxu0 %v513
    %v668 = vpop.f32.mrf.mxu0
    %v669 = vadd.f32 0.0, %v668
    %v670 = vpop.f32.mrf.mxu0
    %v671 = vadd.f32 0.0, %v670
    %672 = vmatmul.bf16.gmra.mxu0 %v516
    %v673 = vpop.f32.mrf.mxu0
    %v674 = vadd.f32 0.0, %v673
    %v675 = vpop.f32.mrf.mxu0
    %v676 = vadd.f32 0.0, %v675
    %677 = vmatmul.bf16.gmra.mxu0 %v519
    %v678 = vpop.f32.mrf.mxu0
    %v679 = vadd.f32 0.0, %v678
    %v680 = vpop.f32.mrf.mxu0
    %v681 = vadd.f32 0.0, %v680
    %682 = vmatmul.bf16.gmra.mxu0 %v522
    %v683 = vpop.f32.mrf.mxu0
    %v684 = vadd.f32 0.0, %v683
    %v685 = vpop.f32.mrf.mxu0
    %v686 = vadd.f32 0.0, %v685
    %687 = vmatmul.bf16.gmra.mxu0 %v525
    %v688 = vpop.f32.mrf.mxu0
    %v689 = vadd.f32 0.0, %v688
    %v690 = vpop.f32.mrf.mxu0
    %v691 = vadd.f32 0.0, %v690
    %692 = vmatmul.bf16.gmra.mxu0 %v528
    %v693 = vpop.f32.mrf.mxu0
    %v694 = vadd.f32 0.0, %v693
    %v695 = vpop.f32.mrf.mxu0
    %v696 = vadd.f32 0.0, %v695
    %697 = vmatmul.bf16.gmra.mxu0 %v531
    %v698 = vpop.f32.mrf.mxu0
    %v699 = vadd.f32 0.0, %v698
    %v700 = vpop.f32.mrf.mxu0
    %v701 = vadd.f32 0.0, %v700
    %702 = vmatmul.bf16.gmra.mxu0 %v534
    %v703 = vpop.f32.mrf.mxu0
    %v704 = vadd.f32 0.0, %v703
    %v705 = vpop.f32.mrf.mxu0
    %v706 = vadd.f32 0.0, %v705
    %707 = vdwg.mxu0
    %708 = vmatpush.bf16.msra.mxu0 0
    %709 = vmatpush.bf16.msra.mxu0 0
    %710 = vmatpush.bf16.msra.mxu0 0
    %711 = vmatpush.bf16.msra.mxu0 0
    %712 = vmatpush.bf16.msra.mxu0 0
    %713 = vmatpush.bf16.msra.mxu0 0
    %714 = vmatpush.bf16.msra.mxu0 0
    %715 = vmatpush.bf16.msra.mxu0 %v547
    %716 = vmatmul.bf16.gmra.mxu0 %v513
    %v717 = vpop.f32.mrf.mxu0
    %v718 = vadd.f32 0.0, %v717
    %v719 = vpop.f32.mrf.mxu0
    %v720 = vadd.f32 0.0, %v719
    %721 = vmatmul.bf16.gmra.mxu0 %v516
    %v722 = vpop.f32.mrf.mxu0
    %v723 = vadd.f32 0.0, %v722
    %v724 = vpop.f32.mrf.mxu0
    %v725 = vadd.f32 0.0, %v724
    %726 = vmatmul.bf16.gmra.mxu0 %v519
    %v727 = vpop.f32.mrf.mxu0
    %v728 = vadd.f32 0.0, %v727
    %v729 = vpop.f32.mrf.mxu0
    %v730 = vadd.f32 0.0, %v729
    %731 = vmatmul.bf16.gmra.mxu0 %v522
    %v732 = vpop.f32.mrf.mxu0
    %v733 = vadd.f32 0.0, %v732
    %v734 = vpop.f32.mrf.mxu0
    %v735 = vadd.f32 0.0, %v734
    %736 = vmatmul.bf16.gmra.mxu0 %v525
    %v737 = vpop.f32.mrf.mxu0
    %v738 = vadd.f32 0.0, %v737
    %v739 = vpop.f32.mrf.mxu0
    %v740 = vadd.f32 0.0, %v739
    %741 = vmatmul.bf16.gmra.mxu0 %v528
    %v742 = vpop.f32.mrf.mxu0
    %v743 = vadd.f32 0.0, %v742
    %v744 = vpop.f32.mrf.mxu0
    %v745 = vadd.f32 0.0, %v744
    %746 = vmatmul.bf16.gmra.mxu0 %v531
    %v747 = vpop.f32.mrf.mxu0
    %v748 = vadd.f32 0.0, %v747
    %v749 = vpop.f32.mrf.mxu0
    %v750 = vadd.f32 0.0, %v749
    %751 = vmatmul.bf16.gmra.mxu0 %v534
    %v752 = vpop.f32.mrf.mxu0
    %v753 = vadd.f32 0.0, %v752
    %v754 = vpop.f32.mrf.mxu0
    %v755 = vadd.f32 0.0, %v754
    %756 = vdwg.mxu0
    %757 = vmatpush.bf16.msra.mxu0 0
    %758 = vmatpush.bf16.msra.mxu0 0
    %759 = vmatpush.bf16.msra.mxu0 0
    %760 = vmatpush.bf16.msra.mxu0 0
    %761 = vmatpush.bf16.msra.mxu0 0
    %762 = vmatpush.bf16.msra.mxu0 0
    %763 = vmatpush.bf16.msra.mxu0 0
    %764 = vmatpush.bf16.msra.mxu0 %v550
    %765 = vmatmul.bf16.gmra.mxu0 %v513
    %v766 = vpop.f32.mrf.mxu0
    %v767 = vadd.f32 0.0, %v766
    %v768 = vpop.f32.mrf.mxu0
    %v769 = vadd.f32 0.0, %v768
    %770 = vmatmul.bf16.gmra.mxu0 %v516
    %v771 = vpop.f32.mrf.mxu0
    %v772 = vadd.f32 0.0, %v771
    %v773 = vpop.f32.mrf.mxu0
    %v774 = vadd.f32 0.0, %v773
    %775 = vmatmul.bf16.gmra.mxu0 %v519
    %v776 = vpop.f32.mrf.mxu0
    %v777 = vadd.f32 0.0, %v776
    %v778 = vpop.f32.mrf.mxu0
    %v779 = vadd.f32 0.0, %v778
    %780 = vmatmul.bf16.gmra.mxu0 %v522
    %v781 = vpop.f32.mrf.mxu0
    %v782 = vadd.f32 0.0, %v781
    %v783 = vpop.f32.mrf.mxu0
    %v784 = vadd.f32 0.0, %v783
    %785 = vmatmul.bf16.gmra.mxu0 %v525
    %v786 = vpop.f32.mrf.mxu0
    %v787 = vadd.f32 0.0, %v786
    %v788 = vpop.f32.mrf.mxu0
    %v789 = vadd.f32 0.0, %v788
    %790 = vmatmul.bf16.gmra.mxu0 %v528
    %v791 = vpop.f32.mrf.mxu0
    %v792 = vadd.f32 0.0, %v791
    %v793 = vpop.f32.mrf.mxu0
    %v794 = vadd.f32 0.0, %v793
    %795 = vmatmul.bf16.gmra.mxu0 %v531
    %v796 = vpop.f32.mrf.mxu0
    %v797 = vadd.f32 0.0, %v796
    %v798 = vpop.f32.mrf.mxu0
    %v799 = vadd.f32 0.0, %v798
    %800 = vmatmul.bf16.gmra.mxu0 %v534
    %v801 = vpop.f32.mrf.mxu0
    %v802 = vadd.f32 0.0, %v801
    %v803 = vpop.f32.mrf.mxu0
    %v804 = vadd.f32 0.0, %v803
    %805 = vdwg.mxu0
    %806 = vmatpush.bf16.msra.mxu0 0
    %807 = vmatpush.bf16.msra.mxu0 0
    %808 = vmatpush.bf16.msra.mxu0 0
    %809 = vmatpush.bf16.msra.mxu0 0
    %810 = vmatpush.bf16.msra.mxu0 0
    %811 = vmatpush.bf16.msra.mxu0 0
    %812 = vmatpush.bf16.msra.mxu0 0
    %813 = vmatpush.bf16.msra.mxu0 %v553
    %814 = vmatmul.bf16.gmra.mxu0 %v513
    %v815 = vpop.f32.mrf.mxu0
    %v816 = vadd.f32 0.0, %v815
    %v817 = vpop.f32.mrf.mxu0
    %v818 = vadd.f32 0.0, %v817
    %819 = vmatmul.bf16.gmra.mxu0 %v516
    %v820 = vpop.f32.mrf.mxu0
    %v821 = vadd.f32 0.0, %v820
    %v822 = vpop.f32.mrf.mxu0
    %v823 = vadd.f32 0.0, %v822
    %824 = vmatmul.bf16.gmra.mxu0 %v519
    %v825 = vpop.f32.mrf.mxu0
    %v826 = vadd.f32 0.0, %v825
    %v827 = vpop.f32.mrf.mxu0
    %v828 = vadd.f32 0.0, %v827
    %829 = vmatmul.bf16.gmra.mxu0 %v522
    %v830 = vpop.f32.mrf.mxu0
    %v831 = vadd.f32 0.0, %v830
    %v832 = vpop.f32.mrf.mxu0
    %v833 = vadd.f32 0.0, %v832
    %834 = vmatmul.bf16.gmra.mxu0 %v525
    %v835 = vpop.f32.mrf.mxu0
    %v836 = vadd.f32 0.0, %v835
    %v837 = vpop.f32.mrf.mxu0
    %v838 = vadd.f32 0.0, %v837
    %839 = vmatmul.bf16.gmra.mxu0 %v528
    %v840 = vpop.f32.mrf.mxu0
    %v841 = vadd.f32 0.0, %v840
    %v842 = vpop.f32.mrf.mxu0
    %v843 = vadd.f32 0.0, %v842
    %844 = vmatmul.bf16.gmra.mxu0 %v531
    %v845 = vpop.f32.mrf.mxu0
    %v846 = vadd.f32 0.0, %v845
    %v847 = vpop.f32.mrf.mxu0
    %v848 = vadd.f32 0.0, %v847
    %849 = vmatmul.bf16.gmra.mxu0 %v534
    %v850 = vpop.f32.mrf.mxu0
    %v851 = vadd.f32 0.0, %v850
    %v852 = vpop.f32.mrf.mxu0
    %v853 = vadd.f32 0.0, %v852
    %854 = vdwg.mxu0
    %855 = vmatpush.bf16.msra.mxu0 0
    %856 = vmatpush.bf16.msra.mxu0 0
    %857 = vmatpush.bf16.msra.mxu0 0
    %858 = vmatpush.bf16.msra.mxu0 0
    %859 = vmatpush.bf16.msra.mxu0 0
    %860 = vmatpush.bf16.msra.mxu0 0
    %861 = vmatpush.bf16.msra.mxu0 0
    %862 = vmatpush.bf16.msra.mxu0 %v556
    %863 = vmatmul.bf16.gmra.mxu0 %v513
    %v864 = vpop.f32.mrf.mxu0
    %v865 = vadd.f32 0.0, %v864
    %v866 = vpop.f32.mrf.mxu0
    %v867 = vadd.f32 0.0, %v866
    %868 = vmatmul.bf16.gmra.mxu0 %v516
    %v869 = vpop.f32.mrf.mxu0
    %v870 = vadd.f32 0.0, %v869
    %v871 = vpop.f32.mrf.mxu0
    %v872 = vadd.f32 0.0, %v871
    %873 = vmatmul.bf16.gmra.mxu0 %v519
    %v874 = vpop.f32.mrf.mxu0
    %v875 = vadd.f32 0.0, %v874
    %v876 = vpop.f32.mrf.mxu0
    %v877 = vadd.f32 0.0, %v876
    %878 = vmatmul.bf16.gmra.mxu0 %v522
    %v879 = vpop.f32.mrf.mxu0
    %v880 = vadd.f32 0.0, %v879
    %v881 = vpop.f32.mrf.mxu0
    %v882 = vadd.f32 0.0, %v881
    %883 = vmatmul.bf16.gmra.mxu0 %v525
    %v884 = vpop.f32.mrf.mxu0
    %v885 = vadd.f32 0.0, %v884
    %v886 = vpop.f32.mrf.mxu0
    %v887 = vadd.f32 0.0, %v886
    %888 = vmatmul.bf16.gmra.mxu0 %v528
    %v889 = vpop.f32.mrf.mxu0
    %v890 = vadd.f32 0.0, %v889
    %v891 = vpop.f32.mrf.mxu0
    %v892 = vadd.f32 0.0, %v891
    %893 = vmatmul.bf16.gmra.mxu0 %v531
    %v894 = vpop.f32.mrf.mxu0
    %v895 = vadd.f32 0.0, %v894
    %v896 = vpop.f32.mrf.mxu0
    %v897 = vadd.f32 0.0, %v896
    %898 = vmatmul.bf16.gmra.mxu0 %v534
    %v899 = vpop.f32.mrf.mxu0
    %v900 = vadd.f32 0.0, %v899
    %v901 = vpop.f32.mrf.mxu0
    %v902 = vadd.f32 0.0, %v901
    %903 = vdwg.mxu0
    %904 = vmatpush.bf16.msra.mxu0 0
    %905 = vmatpush.bf16.msra.mxu0 0
    %906 = vmatpush.bf16.msra.mxu0 0
    %907 = vmatpush.bf16.msra.mxu0 0
    %908 = vmatpush.bf16.msra.mxu0 0
    %909 = vmatpush.bf16.msra.mxu0 0
    %910 = vmatpush.bf16.msra.mxu0 0
    %911 = vmatpush.bf16.msra.mxu0 %v559
    %912 = vmatmul.bf16.gmra.mxu0 %v513
    %v913 = vpop.f32.mrf.mxu0
    %v914 = vadd.f32 0.0, %v913
    %v915 = vpop.f32.mrf.mxu0
    %v916 = vadd.f32 0.0, %v915
    %917 = vmatmul.bf16.gmra.mxu0 %v516
    %v918 = vpop.f32.mrf.mxu0
    %v919 = vadd.f32 0.0, %v918
    %v920 = vpop.f32.mrf.mxu0
    %v921 = vadd.f32 0.0, %v920
    %922 = vmatmul.bf16.gmra.mxu0 %v519
    %v923 = vpop.f32.mrf.mxu0
    %v924 = vadd.f32 0.0, %v923
    %v925 = vpop.f32.mrf.mxu0
    %v926 = vadd.f32 0.0, %v925
    %927 = vmatmul.bf16.gmra.mxu0 %v522
    %v928 = vpop.f32.mrf.mxu0
    %v929 = vadd.f32 0.0, %v928
    %v930 = vpop.f32.mrf.mxu0
    %v931 = vadd.f32 0.0, %v930
    %932 = vmatmul.bf16.gmra.mxu0 %v525
    %v933 = vpop.f32.mrf.mxu0
    %v934 = vadd.f32 0.0, %v933
    %v935 = vpop.f32.mrf.mxu0
    %v936 = vadd.f32 0.0, %v935
    %937 = vmatmul.bf16.gmra.mxu0 %v528
    %v938 = vpop.f32.mrf.mxu0
    %v939 = vadd.f32 0.0, %v938
    %v940 = vpop.f32.mrf.mxu0
    %v941 = vadd.f32 0.0, %v940
    %942 = vmatmul.bf16.gmra.mxu0 %v531
    %v943 = vpop.f32.mrf.mxu0
    %v944 = vadd.f32 0.0, %v943
    %v945 = vpop.f32.mrf.mxu0
    %v946 = vadd.f32 0.0, %v945
    %947 = vmatmul.bf16.gmra.mxu0 %v534
    %v948 = vpop.f32.mrf.mxu0
    %v949 = vadd.f32 0.0, %v948
    %v950 = vpop.f32.mrf.mxu0
    %v951 = vadd.f32 0.0, %v950
    %952 = vdwg.mxu0
    %v953 = vld [vmem:[#allocation3] sm:$0xff]
    %v954 = vld [vmem:[#allocation3 + $0x8] sm:$0xff]
    %v955 = vld [vmem:[#allocation3 + $0x10] sm:$0xff]
    %v956 = vld [vmem:[#allocation3 + $0x18] sm:$0xff]
    %v961 = vunpack.c.l.b16 %v953
    %v962 = vunpack.c.h.b16 %v953
    %v963 = vunpack.c.l.b16 %v954
    %v964 = vunpack.c.h.b16 %v954
    %v965 = vunpack.c.l.b16 %v955
    %v966 = vunpack.c.h.b16 %v955
    %v967 = vunpack.c.l.b16 %v956
    %v968 = vunpack.c.h.b16 %v956
    %v969 = vpack.c.b16 %v963, %v961
    %v970 = vpack.c.b16 %v964, %v962
    %v971 = vpack.c.b16 %v967, %v965
    %v972 = vpack.c.b16 %v968, %v966
    %vm977 = vcmask 261120
    %v979 = vsel %vm977, %v479, 0
    %v982 = vsel %vm977, %v480, 0
    %v985 = vsel %vm977, %v481, 0
    %v988 = vsel %vm977, %v482, 0
    %v991 = vsel %vm977, %v483, 0
    %v994 = vsel %vm977, %v484, 0
    %v997 = vsel %vm977, %v485, 0
    %v1000 = vsel %vm977, %v486, 0
    %1002 = vmatpush.bf16.msra.mxu0 0
    %1003 = vmatpush.bf16.msra.mxu0 0
    %1004 = vmatpush.bf16.msra.mxu0 0
    %1005 = vmatpush.bf16.msra.mxu0 0
    %1006 = vmatpush.bf16.msra.mxu0 0
    %1007 = vmatpush.bf16.msra.mxu0 0
    %1008 = vmatpush.bf16.msra.mxu0 %v971
    %1009 = vmatpush.bf16.msra.mxu0 %v969
    %1010 = vmatmul.bf16.gmra.mxu0 %v979
    %v1011 = vpop.f32.mrf.mxu0
    %v1012 = vadd.f32 0.0, %v1011
    %v1013 = vpop.f32.mrf.mxu0
    %v1014 = vadd.f32 0.0, %v1013
    %1015 = vmatmul.bf16.gmra.mxu0 %v982
    %v1016 = vpop.f32.mrf.mxu0
    %v1017 = vadd.f32 0.0, %v1016
    %v1018 = vpop.f32.mrf.mxu0
    %v1019 = vadd.f32 0.0, %v1018
    %1020 = vmatmul.bf16.gmra.mxu0 %v985
    %v1021 = vpop.f32.mrf.mxu0
    %v1022 = vadd.f32 0.0, %v1021
    %v1023 = vpop.f32.mrf.mxu0
    %v1024 = vadd.f32 0.0, %v1023
    %1025 = vmatmul.bf16.gmra.mxu0 %v988
    %v1026 = vpop.f32.mrf.mxu0
    %v1027 = vadd.f32 0.0, %v1026
    %v1028 = vpop.f32.mrf.mxu0
    %v1029 = vadd.f32 0.0, %v1028
    %1030 = vmatmul.bf16.gmra.mxu0 %v991
    %v1031 = vpop.f32.mrf.mxu0
    %v1032 = vadd.f32 0.0, %v1031
    %v1033 = vpop.f32.mrf.mxu0
    %v1034 = vadd.f32 0.0, %v1033
    %1035 = vmatmul.bf16.gmra.mxu0 %v994
    %v1036 = vpop.f32.mrf.mxu0
    %v1037 = vadd.f32 0.0, %v1036
    %v1038 = vpop.f32.mrf.mxu0
    %v1039 = vadd.f32 0.0, %v1038
    %1040 = vmatmul.bf16.gmra.mxu0 %v997
    %v1041 = vpop.f32.mrf.mxu0
    %v1042 = vadd.f32 0.0, %v1041
    %v1043 = vpop.f32.mrf.mxu0
    %v1044 = vadd.f32 0.0, %v1043
    %1045 = vmatmul.bf16.gmra.mxu0 %v1000
    %v1046 = vpop.f32.mrf.mxu0
    %v1047 = vadd.f32 0.0, %v1046
    %v1048 = vpop.f32.mrf.mxu0
    %v1049 = vadd.f32 0.0, %v1048
    %1050 = vdwg.mxu0
    %1051 = vmatpush.bf16.msra.mxu0 0
    %1052 = vmatpush.bf16.msra.mxu0 0
    %1053 = vmatpush.bf16.msra.mxu0 0
    %1054 = vmatpush.bf16.msra.mxu0 0
    %1055 = vmatpush.bf16.msra.mxu0 0
    %1056 = vmatpush.bf16.msra.mxu0 0
    %1057 = vmatpush.bf16.msra.mxu0 %v972
    %1058 = vmatpush.bf16.msra.mxu0 %v970
    %1059 = vmatmul.bf16.gmra.mxu0 %v979
    %v1060 = vpop.f32.mrf.mxu0
    %v1061 = vadd.f32 0.0, %v1060
    %v1062 = vpop.f32.mrf.mxu0
    %v1063 = vadd.f32 0.0, %v1062
    %1064 = vmatmul.bf16.gmra.mxu0 %v982
    %v1065 = vpop.f32.mrf.mxu0
    %v1066 = vadd.f32 0.0, %v1065
    %v1067 = vpop.f32.mrf.mxu0
    %v1068 = vadd.f32 0.0, %v1067
    %1069 = vmatmul.bf16.gmra.mxu0 %v985
    %v1070 = vpop.f32.mrf.mxu0
    %v1071 = vadd.f32 0.0, %v1070
    %v1072 = vpop.f32.mrf.mxu0
    %v1073 = vadd.f32 0.0, %v1072
    %1074 = vmatmul.bf16.gmra.mxu0 %v988
    %v1075 = vpop.f32.mrf.mxu0
    %v1076 = vadd.f32 0.0, %v1075
    %v1077 = vpop.f32.mrf.mxu0
    %v1078 = vadd.f32 0.0, %v1077
    %1079 = vmatmul.bf16.gmra.mxu0 %v991
    %v1080 = vpop.f32.mrf.mxu0
    %v1081 = vadd.f32 0.0, %v1080
    %v1082 = vpop.f32.mrf.mxu0
    %v1083 = vadd.f32 0.0, %v1082
    %1084 = vmatmul.bf16.gmra.mxu0 %v994
    %v1085 = vpop.f32.mrf.mxu0
    %v1086 = vadd.f32 0.0, %v1085
    %v1087 = vpop.f32.mrf.mxu0
    %v1088 = vadd.f32 0.0, %v1087
    %1089 = vmatmul.bf16.gmra.mxu0 %v997
    %v1090 = vpop.f32.mrf.mxu0
    %v1091 = vadd.f32 0.0, %v1090
    %v1092 = vpop.f32.mrf.mxu0
    %v1093 = vadd.f32 0.0, %v1092
    %1094 = vmatmul.bf16.gmra.mxu0 %v1000
    %v1095 = vpop.f32.mrf.mxu0
    %v1096 = vadd.f32 0.0, %v1095
    %v1097 = vpop.f32.mrf.mxu0
    %v1098 = vadd.f32 0.0, %v1097
    %1099 = vdwg.mxu0
    %v1100 = vmul.f32 %v571, %v1012
    %v1101 = vmul.f32 %v620, %v1061
    %v1102 = vmul.f32 %v669, %v1012
    %v1103 = vmul.f32 %v718, %v1061
    %v1104 = vmul.f32 %v767, %v1012
    %v1105 = vmul.f32 %v816, %v1061
    %v1106 = vmul.f32 %v865, %v1012
    %v1107 = vmul.f32 %v914, %v1061
    %v1108 = vmul.f32 %v573, %v1014
    %v1109 = vmul.f32 %v622, %v1063
    %v1110 = vmul.f32 %v671, %v1014
    %v1111 = vmul.f32 %v720, %v1063
    %v1112 = vmul.f32 %v769, %v1014
    %v1113 = vmul.f32 %v818, %v1063
    %v1114 = vmul.f32 %v867, %v1014
    %v1115 = vmul.f32 %v916, %v1063
    %v1116 = vmul.f32 %v576, %v1017
    %v1117 = vmul.f32 %v625, %v1066
    %v1118 = vmul.f32 %v674, %v1017
    %v1119 = vmul.f32 %v723, %v1066
    %v1120 = vmul.f32 %v772, %v1017
    %v1121 = vmul.f32 %v821, %v1066
    %v1122 = vmul.f32 %v870, %v1017
    %v1123 = vmul.f32 %v919, %v1066
    %v1124 = vmul.f32 %v578, %v1019
    %v1125 = vmul.f32 %v627, %v1068
    %v1126 = vmul.f32 %v676, %v1019
    %v1127 = vmul.f32 %v725, %v1068
    %v1128 = vmul.f32 %v774, %v1019
    %v1129 = vmul.f32 %v823, %v1068
    %v1130 = vmul.f32 %v872, %v1019
    %v1131 = vmul.f32 %v921, %v1068
    %v1132 = vmul.f32 %v581, %v1022
    %v1133 = vmul.f32 %v630, %v1071
    %v1134 = vmul.f32 %v679, %v1022
    %v1135 = vmul.f32 %v728, %v1071
    %v1136 = vmul.f32 %v777, %v1022
    %v1137 = vmul.f32 %v826, %v1071
    %v1138 = vmul.f32 %v875, %v1022
    %v1139 = vmul.f32 %v924, %v1071
    %v1140 = vmul.f32 %v583, %v1024
    %v1141 = vmul.f32 %v632, %v1073
    %v1142 = vmul.f32 %v681, %v1024
    %v1143 = vmul.f32 %v730, %v1073
    %v1144 = vmul.f32 %v779, %v1024
    %v1145 = vmul.f32 %v828, %v1073
    %v1146 = vmul.f32 %v877, %v1024
    %v1147 = vmul.f32 %v926, %v1073
    %v1148 = vmul.f32 %v586, %v1027
    %v1149 = vmul.f32 %v635, %v1076
    %v1150 = vmul.f32 %v684, %v1027
    %v1151 = vmul.f32 %v733, %v1076
    %v1152 = vmul.f32 %v782, %v1027
    %v1153 = vmul.f32 %v831, %v1076
    %v1154 = vmul.f32 %v880, %v1027
    %v1155 = vmul.f32 %v929, %v1076
    %v1156 = vmul.f32 %v588, %v1029
    %v1157 = vmul.f32 %v637, %v1078
    %v1158 = vmul.f32 %v686, %v1029
    %v1159 = vmul.f32 %v735, %v1078
    %v1160 = vmul.f32 %v784, %v1029
    %v1161 = vmul.f32 %v833, %v1078
    %v1162 = vmul.f32 %v882, %v1029
    %v1163 = vmul.f32 %v931, %v1078
    %v1164 = vmul.f32 %v591, %v1032
    %v1165 = vmul.f32 %v640, %v1081
    %v1166 = vmul.f32 %v689, %v1032
    %v1167 = vmul.f32 %v738, %v1081
    %v1168 = vmul.f32 %v787, %v1032
    %v1169 = vmul.f32 %v836, %v1081
    %v1170 = vmul.f32 %v885, %v1032
    %v1171 = vmul.f32 %v934, %v1081
    %v1172 = vmul.f32 %v593, %v1034
    %v1173 = vmul.f32 %v642, %v1083
    %v1174 = vmul.f32 %v691, %v1034
    %v1175 = vmul.f32 %v740, %v1083
    %v1176 = vmul.f32 %v789, %v1034
    %v1177 = vmul.f32 %v838, %v1083
    %v1178 = vmul.f32 %v887, %v1034
    %v1179 = vmul.f32 %v936, %v1083
    %v1180 = vmul.f32 %v596, %v1037
    %v1181 = vmul.f32 %v645, %v1086
    %v1182 = vmul.f32 %v694, %v1037
    %v1183 = vmul.f32 %v743, %v1086
    %v1184 = vmul.f32 %v792, %v1037
    %v1185 = vmul.f32 %v841, %v1086
    %v1186 = vmul.f32 %v890, %v1037
    %v1187 = vmul.f32 %v939, %v1086
    %v1188 = vmul.f32 %v598, %v1039
    %v1189 = vmul.f32 %v647, %v1088
    %v1190 = vmul.f32 %v696, %v1039
    %v1191 = vmul.f32 %v745, %v1088
    %v1192 = vmul.f32 %v794, %v1039
    %v1193 = vmul.f32 %v843, %v1088
    %v1194 = vmul.f32 %v892, %v1039
    %v1195 = vmul.f32 %v941, %v1088
    %v1196 = vmul.f32 %v601, %v1042
    %v1197 = vmul.f32 %v650, %v1091
    %v1198 = vmul.f32 %v699, %v1042
    %v1199 = vmul.f32 %v748, %v1091
    %v1200 = vmul.f32 %v797, %v1042
    %v1201 = vmul.f32 %v846, %v1091
    %v1202 = vmul.f32 %v895, %v1042
    %v1203 = vmul.f32 %v944, %v1091
    %v1204 = vmul.f32 %v603, %v1044
    %v1205 = vmul.f32 %v652, %v1093
    %v1206 = vmul.f32 %v701, %v1044
    %v1207 = vmul.f32 %v750, %v1093
    %v1208 = vmul.f32 %v799, %v1044
    %v1209 = vmul.f32 %v848, %v1093
    %v1210 = vmul.f32 %v897, %v1044
    %v1211 = vmul.f32 %v946, %v1093
    %v1212 = vmul.f32 %v606, %v1047
    %v1213 = vmul.f32 %v655, %v1096
    %v1214 = vmul.f32 %v704, %v1047
    %v1215 = vmul.f32 %v753, %v1096
    %v1216 = vmul.f32 %v802, %v1047
    %v1217 = vmul.f32 %v851, %v1096
    %v1218 = vmul.f32 %v900, %v1047
    %v1219 = vmul.f32 %v949, %v1096
    %v1220 = vmul.f32 %v608, %v1049
    %v1221 = vmul.f32 %v657, %v1098
    %v1222 = vmul.f32 %v706, %v1049
    %v1223 = vmul.f32 %v755, %v1098
    %v1224 = vmul.f32 %v804, %v1049
    %v1225 = vmul.f32 %v853, %v1098
    %v1226 = vmul.f32 %v902, %v1049
    %v1227 = vmul.f32 %v951, %v1098
    %v1228 = vpack.c.bf16 %v1108, %v1100
    %v1229 = vpack.c.bf16 %v1109, %v1101
    %v1230 = vpack.c.bf16 %v1110, %v1102
    %v1231 = vpack.c.bf16 %v1111, %v1103
    %v1232 = vpack.c.bf16 %v1112, %v1104
    %v1233 = vpack.c.bf16 %v1113, %v1105
    %v1234 = vpack.c.bf16 %v1114, %v1106
    %v1235 = vpack.c.bf16 %v1115, %v1107
    %v1236 = vpack.c.bf16 %v1124, %v1116
    %v1237 = vpack.c.bf16 %v1125, %v1117
    %v1238 = vpack.c.bf16 %v1126, %v1118
    %v1239 = vpack.c.bf16 %v1127, %v1119
    %v1240 = vpack.c.bf16 %v1128, %v1120
    %v1241 = vpack.c.bf16 %v1129, %v1121
    %v1242 = vpack.c.bf16 %v1130, %v1122
    %v1243 = vpack.c.bf16 %v1131, %v1123
    %v1244 = vpack.c.bf16 %v1140, %v1132
    %v1245 = vpack.c.bf16 %v1141, %v1133
    %v1246 = vpack.c.bf16 %v1142, %v1134
    %v1247 = vpack.c.bf16 %v1143, %v1135
    %v1248 = vpack.c.bf16 %v1144, %v1136
    %v1249 = vpack.c.bf16 %v1145, %v1137
    %v1250 = vpack.c.bf16 %v1146, %v1138
    %v1251 = vpack.c.bf16 %v1147, %v1139
    %v1252 = vpack.c.bf16 %v1156, %v1148
    %v1253 = vpack.c.bf16 %v1157, %v1149
    %v1254 = vpack.c.bf16 %v1158, %v1150
    %v1255 = vpack.c.bf16 %v1159, %v1151
    %v1256 = vpack.c.bf16 %v1160, %v1152
    %v1257 = vpack.c.bf16 %v1161, %v1153
    %v1258 = vpack.c.bf16 %v1162, %v1154
    %v1259 = vpack.c.bf16 %v1163, %v1155
    %v1260 = vpack.c.bf16 %v1172, %v1164
    %v1261 = vpack.c.bf16 %v1173, %v1165
    %v1262 = vpack.c.bf16 %v1174, %v1166
    %v1263 = vpack.c.bf16 %v1175, %v1167
    %v1264 = vpack.c.bf16 %v1176, %v1168
    %v1265 = vpack.c.bf16 %v1177, %v1169
    %v1266 = vpack.c.bf16 %v1178, %v1170
    %v1267 = vpack.c.bf16 %v1179, %v1171
    %v1268 = vpack.c.bf16 %v1188, %v1180
    %v1269 = vpack.c.bf16 %v1189, %v1181
    %v1270 = vpack.c.bf16 %v1190, %v1182
    %v1271 = vpack.c.bf16 %v1191, %v1183
    %v1272 = vpack.c.bf16 %v1192, %v1184
    %v1273 = vpack.c.bf16 %v1193, %v1185
    %v1274 = vpack.c.bf16 %v1194, %v1186
    %v1275 = vpack.c.bf16 %v1195, %v1187
    %v1276 = vpack.c.bf16 %v1204, %v1196
    %v1277 = vpack.c.bf16 %v1205, %v1197
    %v1278 = vpack.c.bf16 %v1206, %v1198
    %v1279 = vpack.c.bf16 %v1207, %v1199
    %v1280 = vpack.c.bf16 %v1208, %v1200
    %v1281 = vpack.c.bf16 %v1209, %v1201
    %v1282 = vpack.c.bf16 %v1210, %v1202
    %v1283 = vpack.c.bf16 %v1211, %v1203
    %v1284 = vpack.c.bf16 %v1220, %v1212
    %v1285 = vpack.c.bf16 %v1221, %v1213
    %v1286 = vpack.c.bf16 %v1222, %v1214
    %v1287 = vpack.c.bf16 %v1223, %v1215
    %v1288 = vpack.c.bf16 %v1224, %v1216
    %v1289 = vpack.c.bf16 %v1225, %v1217
    %v1290 = vpack.c.bf16 %v1226, %v1218
    %v1291 = vpack.c.bf16 %v1227, %v1219
    %v1292 = vld [vmem:[#allocation4] sm:$0xf]
    %v1293 = vld [vmem:[#allocation4 + $0x4] sm:$0xf]
    %v1294 = vld [vmem:[#allocation4 + $0x8] sm:$0xf]
    %v1295 = vld [vmem:[#allocation4 + $0xc] sm:$0xf]
    %v1296 = vld [vmem:[#allocation4 + $0x10] sm:$0xf]
    %v1297 = vld [vmem:[#allocation4 + $0x14] sm:$0xf]
    %v1298 = vld [vmem:[#allocation4 + $0x18] sm:$0xf]
    %v1299 = vld [vmem:[#allocation4 + $0x1c] sm:$0xf]
    %v1300 = vld [vmem:[#allocation4 + $0x20] sm:$0xf]
    %v1301 = vld [vmem:[#allocation4 + $0x24] sm:$0xf]
    %v1302 = vld [vmem:[#allocation4 + $0x28] sm:$0xf]
    %v1303 = vld [vmem:[#allocation4 + $0x2c] sm:$0xf]
    %v1304 = vld [vmem:[#allocation4 + $0x30] sm:$0xf]
    %v1305 = vld [vmem:[#allocation4 + $0x34] sm:$0xf]
    %v1306 = vld [vmem:[#allocation4 + $0x38] sm:$0xf]
    %v1307 = vld [vmem:[#allocation4 + $0x3c] sm:$0xf]
    %v1308 = vld [vmem:[#allocation4 + $0x40] sm:$0xf]
    %v1309 = vld [vmem:[#allocation4 + $0x44] sm:$0xf]
    %v1310 = vld [vmem:[#allocation4 + $0x48] sm:$0xf]
    %v1311 = vld [vmem:[#allocation4 + $0x4c] sm:$0xf]
    %v1312 = vld [vmem:[#allocation4 + $0x50] sm:$0xf]
    %v1313 = vld [vmem:[#allocation4 + $0x54] sm:$0xf]
    %v1314 = vld [vmem:[#allocation4 + $0x58] sm:$0xf]
    %v1315 = vld [vmem:[#allocation4 + $0x5c] sm:$0xf]
    %v1316 = vld [vmem:[#allocation4 + $0x60] sm:$0xf]
    %v1317 = vld [vmem:[#allocation4 + $0x64] sm:$0xf]
    %v1318 = vld [vmem:[#allocation4 + $0x68] sm:$0xf]
    %v1319 = vld [vmem:[#allocation4 + $0x6c] sm:$0xf]
    %v1320 = vld [vmem:[#allocation4 + $0x70] sm:$0xf]
    %v1321 = vld [vmem:[#allocation4 + $0x74] sm:$0xf]
    %v1322 = vld [vmem:[#allocation4 + $0x78] sm:$0xf]
    %v1323 = vld [vmem:[#allocation4 + $0x7c] sm:$0xf]
    %v1324 = vld [vmem:[#allocation4 + $0x80] sm:$0xf]
    %v1325 = vld [vmem:[#allocation4 + $0x84] sm:$0xf]
    %v1326 = vld [vmem:[#allocation4 + $0x88] sm:$0xf]
    %v1327 = vld [vmem:[#allocation4 + $0x8c] sm:$0xf]
    %v1328 = vld [vmem:[#allocation4 + $0x90] sm:$0xf]
    %v1329 = vld [vmem:[#allocation4 + $0x94] sm:$0xf]
    %v1330 = vld [vmem:[#allocation4 + $0x98] sm:$0xf]
    %v1331 = vld [vmem:[#allocation4 + $0x9c] sm:$0xf]
    %v1332 = vld [vmem:[#allocation4 + $0xa0] sm:$0xf]
    %v1333 = vld [vmem:[#allocation4 + $0xa4] sm:$0xf]
    %v1334 = vld [vmem:[#allocation4 + $0xa8] sm:$0xf]
    %v1335 = vld [vmem:[#allocation4 + $0xac] sm:$0xf]
    %v1336 = vld [vmem:[#allocation4 + $0xb0] sm:$0xf]
    %v1337 = vld [vmem:[#allocation4 + $0xb4] sm:$0xf]
    %v1338 = vld [vmem:[#allocation4 + $0xb8] sm:$0xf]
    %v1339 = vld [vmem:[#allocation4 + $0xbc] sm:$0xf]
    %v1340 = vld [vmem:[#allocation4 + $0xc0] sm:$0xf]
    %v1341 = vld [vmem:[#allocation4 + $0xc4] sm:$0xf]
    %v1342 = vld [vmem:[#allocation4 + $0xc8] sm:$0xf]
    %v1343 = vld [vmem:[#allocation4 + $0xcc] sm:$0xf]
    %v1344 = vld [vmem:[#allocation4 + $0xd0] sm:$0xf]
    %v1345 = vld [vmem:[#allocation4 + $0xd4] sm:$0xf]
    %v1346 = vld [vmem:[#allocation4 + $0xd8] sm:$0xf]
    %v1347 = vld [vmem:[#allocation4 + $0xdc] sm:$0xf]
    %v1348 = vld [vmem:[#allocation4 + $0xe0] sm:$0xf]
    %v1349 = vld [vmem:[#allocation4 + $0xe4] sm:$0xf]
    %v1350 = vld [vmem:[#allocation4 + $0xe8] sm:$0xf]
    %v1351 = vld [vmem:[#allocation4 + $0xec] sm:$0xf]
    %v1352 = vld [vmem:[#allocation4 + $0xf0] sm:$0xf]
    %v1353 = vld [vmem:[#allocation4 + $0xf4] sm:$0xf]
    %v1354 = vld [vmem:[#allocation4 + $0xf8] sm:$0xf]
    %v1355 = vld [vmem:[#allocation4 + $0xfc] sm:$0xf]
    %v1356 = vld [vmem:[#allocation4 + $0x100] sm:$0xf]
    %v1357 = vld [vmem:[#allocation4 + $0x104] sm:$0xf]
    %v1358 = vld [vmem:[#allocation4 + $0x108] sm:$0xf]
    %v1359 = vld [vmem:[#allocation4 + $0x10c] sm:$0xf]
    %v1360 = vld [vmem:[#allocation4 + $0x110] sm:$0xf]
    %v1361 = vld [vmem:[#allocation4 + $0x114] sm:$0xf]
    %v1362 = vld [vmem:[#allocation4 + $0x118] sm:$0xf]
    %v1363 = vld [vmem:[#allocation4 + $0x11c] sm:$0xf]
    %v1364 = vld [vmem:[#allocation4 + $0x120] sm:$0xf]
    %v1365 = vld [vmem:[#allocation4 + $0x124] sm:$0xf]
    %v1366 = vld [vmem:[#allocation4 + $0x128] sm:$0xf]
    %v1367 = vld [vmem:[#allocation4 + $0x12c] sm:$0xf]
    %v1368 = vld [vmem:[#allocation4 + $0x130] sm:$0xf]
    %v1369 = vld [vmem:[#allocation4 + $0x134] sm:$0xf]
    %v1370 = vld [vmem:[#allocation4 + $0x138] sm:$0xf]
    %v1371 = vld [vmem:[#allocation4 + $0x13c] sm:$0xf]
    %v1372 = vld [vmem:[#allocation4 + $0x140] sm:$0xf]
    %v1373 = vld [vmem:[#allocation4 + $0x144] sm:$0xf]
    %v1374 = vld [vmem:[#allocation4 + $0x148] sm:$0xf]
    %v1375 = vld [vmem:[#allocation4 + $0x14c] sm:$0xf]
    %v1376 = vld [vmem:[#allocation4 + $0x150] sm:$0xf]
    %v1377 = vld [vmem:[#allocation4 + $0x154] sm:$0xf]
    %v1378 = vld [vmem:[#allocation4 + $0x158] sm:$0xf]
    %v1379 = vld [vmem:[#allocation4 + $0x15c] sm:$0xf]
    %v1380 = vld [vmem:[#allocation4 + $0x160] sm:$0xf]
    %v1381 = vld [vmem:[#allocation4 + $0x164] sm:$0xf]
    %v1382 = vld [vmem:[#allocation4 + $0x168] sm:$0xf]
    %v1383 = vld [vmem:[#allocation4 + $0x16c] sm:$0xf]
    %v1384 = vld [vmem:[#allocation4 + $0x170] sm:$0xf]
    %v1385 = vld [vmem:[#allocation4 + $0x174] sm:$0xf]
    %v1386 = vld [vmem:[#allocation4 + $0x178] sm:$0xf]
    %v1387 = vld [vmem:[#allocation4 + $0x17c] sm:$0xf]
    %v1388 = vld [vmem:[#allocation4 + $0x180] sm:$0xf]
    %v1389 = vld [vmem:[#allocation4 + $0x184] sm:$0xf]
    %v1390 = vld [vmem:[#allocation4 + $0x188] sm:$0xf]
    %v1391 = vld [vmem:[#allocation4 + $0x18c] sm:$0xf]
    %v1392 = vld [vmem:[#allocation4 + $0x190] sm:$0xf]
    %v1393 = vld [vmem:[#allocation4 + $0x194] sm:$0xf]
    %v1394 = vld [vmem:[#allocation4 + $0x198] sm:$0xf]
    %v1395 = vld [vmem:[#allocation4 + $0x19c] sm:$0xf]
    %v1396 = vld [vmem:[#allocation4 + $0x1a0] sm:$0xf]
    %v1397 = vld [vmem:[#allocation4 + $0x1a4] sm:$0xf]
    %v1398 = vld [vmem:[#allocation4 + $0x1a8] sm:$0xf]
    %v1399 = vld [vmem:[#allocation4 + $0x1ac] sm:$0xf]
    %v1400 = vld [vmem:[#allocation4 + $0x1b0] sm:$0xf]
    %v1401 = vld [vmem:[#allocation4 + $0x1b4] sm:$0xf]
    %v1402 = vld [vmem:[#allocation4 + $0x1b8] sm:$0xf]
    %v1403 = vld [vmem:[#allocation4 + $0x1bc] sm:$0xf]
    %v1404 = vld [vmem:[#allocation4 + $0x1c0] sm:$0xf]
    %v1405 = vld [vmem:[#allocation4 + $0x1c4] sm:$0xf]
    %v1406 = vld [vmem:[#allocation4 + $0x1c8] sm:$0xf]
    %v1407 = vld [vmem:[#allocation4 + $0x1cc] sm:$0xf]
    %v1408 = vld [vmem:[#allocation4 + $0x1d0] sm:$0xf]
    %v1409 = vld [vmem:[#allocation4 + $0x1d4] sm:$0xf]
    %v1410 = vld [vmem:[#allocation4 + $0x1d8] sm:$0xf]
    %v1411 = vld [vmem:[#allocation4 + $0x1dc] sm:$0xf]
    %v1412 = vld [vmem:[#allocation4 + $0x1e0] sm:$0xf]
    %v1413 = vld [vmem:[#allocation4 + $0x1e4] sm:$0xf]
    %v1414 = vld [vmem:[#allocation4 + $0x1e8] sm:$0xf]
    %v1415 = vld [vmem:[#allocation4 + $0x1ec] sm:$0xf]
    %v1416 = vld [vmem:[#allocation4 + $0x1f0] sm:$0xf]
    %v1417 = vld [vmem:[#allocation4 + $0x1f4] sm:$0xf]
    %v1418 = vld [vmem:[#allocation4 + $0x1f8] sm:$0xf]
    %v1419 = vld [vmem:[#allocation4 + $0x1fc] sm:$0xf]
    %v1548 = vunpack.c.l.b16 %v1292
    %v1549 = vunpack.c.l.b16 %v1293
    %v1550 = vunpack.c.l.b16 %v1294
    %v1551 = vunpack.c.l.b16 %v1295
    %v1552 = vunpack.c.l.b16 %v1296
    %v1553 = vunpack.c.l.b16 %v1297
    %v1554 = vunpack.c.l.b16 %v1298
    %v1555 = vunpack.c.l.b16 %v1299
    %v1556 = vunpack.c.l.b16 %v1300
    %v1557 = vunpack.c.l.b16 %v1301
    %v1558 = vunpack.c.l.b16 %v1302
    %v1559 = vunpack.c.l.b16 %v1303
    %v1560 = vunpack.c.l.b16 %v1304
    %v1561 = vunpack.c.l.b16 %v1305
    %v1562 = vunpack.c.l.b16 %v1306
    %v1563 = vunpack.c.l.b16 %v1307
    %v1564 = vunpack.c.l.b16 %v1308
    %v1565 = vunpack.c.l.b16 %v1309
    %v1566 = vunpack.c.l.b16 %v1310
    %v1567 = vunpack.c.l.b16 %v1311
    %v1568 = vunpack.c.l.b16 %v1312
    %v1569 = vunpack.c.l.b16 %v1313
    %v1570 = vunpack.c.l.b16 %v1314
    %v1571 = vunpack.c.l.b16 %v1315
    %v1572 = vunpack.c.l.b16 %v1316
    %v1573 = vunpack.c.l.b16 %v1317
    %v1574 = vunpack.c.l.b16 %v1318
    %v1575 = vunpack.c.l.b16 %v1319
    %v1576 = vunpack.c.l.b16 %v1320
    %v1577 = vunpack.c.l.b16 %v1321
    %v1578 = vunpack.c.l.b16 %v1322
    %v1579 = vunpack.c.l.b16 %v1323
    %v1580 = vunpack.c.l.b16 %v1324
    %v1581 = vunpack.c.l.b16 %v1325
    %v1582 = vunpack.c.l.b16 %v1326
    %v1583 = vunpack.c.l.b16 %v1327
    %v1584 = vunpack.c.l.b16 %v1328
    %v1585 = vunpack.c.l.b16 %v1329
    %v1586 = vunpack.c.l.b16 %v1330
    %v1587 = vunpack.c.l.b16 %v1331
    %v1588 = vunpack.c.l.b16 %v1332
    %v1589 = vunpack.c.l.b16 %v1333
    %v1590 = vunpack.c.l.b16 %v1334
    %v1591 = vunpack.c.l.b16 %v1335
    %v1592 = vunpack.c.l.b16 %v1336
    %v1593 = vunpack.c.l.b16 %v1337
    %v1594 = vunpack.c.l.b16 %v1338
    %v1595 = vunpack.c.l.b16 %v1339
    %v1596 = vunpack.c.l.b16 %v1340
    %v1597 = vunpack.c.l.b16 %v1341
    %v1598 = vunpack.c.l.b16 %v1342
    %v1599 = vunpack.c.l.b16 %v1343
    %v1600 = vunpack.c.l.b16 %v1344
    %v1601 = vunpack.c.l.b16 %v1345
    %v1602 = vunpack.c.l.b16 %v1346
    %v1603 = vunpack.c.l.b16 %v1347
    %v1604 = vunpack.c.l.b16 %v1348
    %v1605 = vunpack.c.l.b16 %v1349
    %v1606 = vunpack.c.l.b16 %v1350
    %v1607 = vunpack.c.l.b16 %v1351
    %v1608 = vunpack.c.l.b16 %v1352
    %v1609 = vunpack.c.l.b16 %v1353
    %v1610 = vunpack.c.l.b16 %v1354
    %v1611 = vunpack.c.l.b16 %v1355
    %v1612 = vunpack.c.l.b16 %v1356
    %v1613 = vunpack.c.l.b16 %v1357
    %v1614 = vunpack.c.l.b16 %v1358
    %v1615 = vunpack.c.l.b16 %v1359
    %v1616 = vunpack.c.l.b16 %v1360
    %v1617 = vunpack.c.l.b16 %v1361
    %v1618 = vunpack.c.l.b16 %v1362
    %v1619 = vunpack.c.l.b16 %v1363
    %v1620 = vunpack.c.l.b16 %v1364
    %v1621 = vunpack.c.l.b16 %v1365
    %v1622 = vunpack.c.l.b16 %v1366
    %v1623 = vunpack.c.l.b16 %v1367
    %v1624 = vunpack.c.l.b16 %v1368
    %v1625 = vunpack.c.l.b16 %v1369
    %v1626 = vunpack.c.l.b16 %v1370
    %v1627 = vunpack.c.l.b16 %v1371
    %v1628 = vunpack.c.l.b16 %v1372
    %v1629 = vunpack.c.l.b16 %v1373
    %v1630 = vunpack.c.l.b16 %v1374
    %v1631 = vunpack.c.l.b16 %v1375
    %v1632 = vunpack.c.l.b16 %v1376
    %v1633 = vunpack.c.l.b16 %v1377
    %v1634 = vunpack.c.l.b16 %v1378
    %v1635 = vunpack.c.l.b16 %v1379
    %v1636 = vunpack.c.l.b16 %v1380
    %v1637 = vunpack.c.l.b16 %v1381
    %v1638 = vunpack.c.l.b16 %v1382
    %v1639 = vunpack.c.l.b16 %v1383
    %v1640 = vunpack.c.l.b16 %v1384
    %v1641 = vunpack.c.l.b16 %v1385
    %v1642 = vunpack.c.l.b16 %v1386
    %v1643 = vunpack.c.l.b16 %v1387
    %v1644 = vunpack.c.l.b16 %v1388
    %v1645 = vunpack.c.l.b16 %v1389
    %v1646 = vunpack.c.l.b16 %v1390
    %v1647 = vunpack.c.l.b16 %v1391
    %v1648 = vunpack.c.l.b16 %v1392
    %v1649 = vunpack.c.l.b16 %v1393
    %v1650 = vunpack.c.l.b16 %v1394
    %v1651 = vunpack.c.l.b16 %v1395
    %v1652 = vunpack.c.l.b16 %v1396
    %v1653 = vunpack.c.l.b16 %v1397
    %v1654 = vunpack.c.l.b16 %v1398
    %v1655 = vunpack.c.l.b16 %v1399
    %v1656 = vunpack.c.l.b16 %v1400
    %v1657 = vunpack.c.l.b16 %v1401
    %v1658 = vunpack.c.l.b16 %v1402
    %v1659 = vunpack.c.l.b16 %v1403
    %v1660 = vunpack.c.l.b16 %v1404
    %v1661 = vunpack.c.l.b16 %v1405
    %v1662 = vunpack.c.l.b16 %v1406
    %v1663 = vunpack.c.l.b16 %v1407
    %v1664 = vunpack.c.l.b16 %v1408
    %v1665 = vunpack.c.l.b16 %v1409
    %v1666 = vunpack.c.l.b16 %v1410
    %v1667 = vunpack.c.l.b16 %v1411
    %v1668 = vunpack.c.l.b16 %v1412
    %v1669 = vunpack.c.l.b16 %v1413
    %v1670 = vunpack.c.l.b16 %v1414
    %v1671 = vunpack.c.l.b16 %v1415
    %v1672 = vunpack.c.l.b16 %v1416
    %v1673 = vunpack.c.l.b16 %v1417
    %v1674 = vunpack.c.l.b16 %v1418
    %v1675 = vunpack.c.l.b16 %v1419
    %v1676 = vpack.c.b16 %v1549, %v1548
    %v1677 = vpack.c.b16 %v1551, %v1550
    %v1678 = vpack.c.b16 %v1553, %v1552
    %v1679 = vpack.c.b16 %v1555, %v1554
    %v1680 = vpack.c.b16 %v1557, %v1556
    %v1681 = vpack.c.b16 %v1559, %v1558
    %v1682 = vpack.c.b16 %v1561, %v1560
    %v1683 = vpack.c.b16 %v1563, %v1562
    %v1684 = vpack.c.b16 %v1565, %v1564
    %v1685 = vpack.c.b16 %v1567, %v1566
    %v1686 = vpack.c.b16 %v1569, %v1568
    %v1687 = vpack.c.b16 %v1571, %v1570
    %v1688 = vpack.c.b16 %v1573, %v1572
    %v1689 = vpack.c.b16 %v1575, %v1574
    %v1690 = vpack.c.b16 %v1577, %v1576
    %v1691 = vpack.c.b16 %v1579, %v1578
    %v1692 = vpack.c.b16 %v1581, %v1580
    %v1693 = vpack.c.b16 %v1583, %v1582
    %v1694 = vpack.c.b16 %v1585, %v1584
    %v1695 = vpack.c.b16 %v1587, %v1586
    %v1696 = vpack.c.b16 %v1589, %v1588
    %v1697 = vpack.c.b16 %v1591, %v1590
    %v1698 = vpack.c.b16 %v1593, %v1592
    %v1699 = vpack.c.b16 %v1595, %v1594
    %v1700 = vpack.c.b16 %v1597, %v1596
    %v1701 = vpack.c.b16 %v1599, %v1598
    %v1702 = vpack.c.b16 %v1601, %v1600
    %v1703 = vpack.c.b16 %v1603, %v1602
    %v1704 = vpack.c.b16 %v1605, %v1604
    %v1705 = vpack.c.b16 %v1607, %v1606
    %v1706 = vpack.c.b16 %v1609, %v1608
    %v1707 = vpack.c.b16 %v1611, %v1610
    %v1708 = vpack.c.b16 %v1613, %v1612
    %v1709 = vpack.c.b16 %v1615, %v1614
    %v1710 = vpack.c.b16 %v1617, %v1616
    %v1711 = vpack.c.b16 %v1619, %v1618
    %v1712 = vpack.c.b16 %v1621, %v1620
    %v1713 = vpack.c.b16 %v1623, %v1622
    %v1714 = vpack.c.b16 %v1625, %v1624
    %v1715 = vpack.c.b16 %v1627, %v1626
    %v1716 = vpack.c.b16 %v1629, %v1628
    %v1717 = vpack.c.b16 %v1631, %v1630
    %v1718 = vpack.c.b16 %v1633, %v1632
    %v1719 = vpack.c.b16 %v1635, %v1634
    %v1720 = vpack.c.b16 %v1637, %v1636
    %v1721 = vpack.c.b16 %v1639, %v1638
    %v1722 = vpack.c.b16 %v1641, %v1640
    %v1723 = vpack.c.b16 %v1643, %v1642
    %v1724 = vpack.c.b16 %v1645, %v1644
    %v1725 = vpack.c.b16 %v1647, %v1646
    %v1726 = vpack.c.b16 %v1649, %v1648
    %v1727 = vpack.c.b16 %v1651, %v1650
    %v1728 = vpack.c.b16 %v1653, %v1652
    %v1729 = vpack.c.b16 %v1655, %v1654
    %v1730 = vpack.c.b16 %v1657, %v1656
    %v1731 = vpack.c.b16 %v1659, %v1658
    %v1732 = vpack.c.b16 %v1661, %v1660
    %v1733 = vpack.c.b16 %v1663, %v1662
    %v1734 = vpack.c.b16 %v1665, %v1664
    %v1735 = vpack.c.b16 %v1667, %v1666
    %v1736 = vpack.c.b16 %v1669, %v1668
    %v1737 = vpack.c.b16 %v1671, %v1670
    %v1738 = vpack.c.b16 %v1673, %v1672
    %v1739 = vpack.c.b16 %v1675, %v1674
    %1804 = vmatpush.bf16.msra.mxu0 %v1683
    %1805 = vmatpush.bf16.msra.mxu0 %v1682
    %1806 = vmatpush.bf16.msra.mxu0 %v1681
    %1807 = vmatpush.bf16.msra.mxu0 %v1680
    %1808 = vmatpush.bf16.msra.mxu0 %v1679
    %1809 = vmatpush.bf16.msra.mxu0 %v1678
    %1810 = vmatpush.bf16.msra.mxu0 %v1677
    %1811 = vmatpush.bf16.msra.mxu0 %v1676
    %1812 = vmatmul.bf16.gmra.mxu0 %v1228
    %v1813 = vpop.f32.mrf.mxu0
    %v1814 = vadd.f32 0.0, %v1813
    %v1815 = vpop.f32.mrf.mxu0
    %v1816 = vadd.f32 0.0, %v1815
    %1817 = vmatmul.bf16.gmra.mxu0 %v1236
    %v1818 = vpop.f32.mrf.mxu0
    %v1819 = vadd.f32 0.0, %v1818
    %v1820 = vpop.f32.mrf.mxu0
    %v1821 = vadd.f32 0.0, %v1820
    %1822 = vmatmul.bf16.gmra.mxu0 %v1244
    %v1823 = vpop.f32.mrf.mxu0
    %v1824 = vadd.f32 0.0, %v1823
    %v1825 = vpop.f32.mrf.mxu0
    %v1826 = vadd.f32 0.0, %v1825
    %1827 = vmatmul.bf16.gmra.mxu0 %v1252
    %v1828 = vpop.f32.mrf.mxu0
    %v1829 = vadd.f32 0.0, %v1828
    %v1830 = vpop.f32.mrf.mxu0
    %v1831 = vadd.f32 0.0, %v1830
    %1832 = vmatmul.bf16.gmra.mxu0 %v1260
    %v1833 = vpop.f32.mrf.mxu0
    %v1834 = vadd.f32 0.0, %v1833
    %v1835 = vpop.f32.mrf.mxu0
    %v1836 = vadd.f32 0.0, %v1835
    %1837 = vmatmul.bf16.gmra.mxu0 %v1268
    %v1838 = vpop.f32.mrf.mxu0
    %v1839 = vadd.f32 0.0, %v1838
    %v1840 = vpop.f32.mrf.mxu0
    %v1841 = vadd.f32 0.0, %v1840
    %1842 = vmatmul.bf16.gmra.mxu0 %v1276
    %v1843 = vpop.f32.mrf.mxu0
    %v1844 = vadd.f32 0.0, %v1843
    %v1845 = vpop.f32.mrf.mxu0
    %v1846 = vadd.f32 0.0, %v1845
    %1847 = vmatmul.bf16.gmra.mxu0 %v1284
    %v1848 = vpop.f32.mrf.mxu0
    %v1849 = vadd.f32 0.0, %v1848
    %v1850 = vpop.f32.mrf.mxu0
    %v1851 = vadd.f32 0.0, %v1850
    %1852 = vdwg.mxu0
    %1853 = vmatpush.bf16.msra.mxu0 %v1691
    %1854 = vmatpush.bf16.msra.mxu0 %v1690
    %1855 = vmatpush.bf16.msra.mxu0 %v1689
    %1856 = vmatpush.bf16.msra.mxu0 %v1688
    %1857 = vmatpush.bf16.msra.mxu0 %v1687
    %1858 = vmatpush.bf16.msra.mxu0 %v1686
    %1859 = vmatpush.bf16.msra.mxu0 %v1685
    %1860 = vmatpush.bf16.msra.mxu0 %v1684
    %1861 = vmatmul.bf16.gmra.mxu0 %v1229
    %v1862 = vpop.f32.mrf.mxu0
    %v1863 = vadd.f32 %v1814, %v1862
    %v1864 = vpop.f32.mrf.mxu0
    %v1865 = vadd.f32 %v1816, %v1864
    %1866 = vmatmul.bf16.gmra.mxu0 %v1237
    %v1867 = vpop.f32.mrf.mxu0
    %v1868 = vadd.f32 %v1819, %v1867
    %v1869 = vpop.f32.mrf.mxu0
    %v1870 = vadd.f32 %v1821, %v1869
    %1871 = vmatmul.bf16.gmra.mxu0 %v1245
    %v1872 = vpop.f32.mrf.mxu0
    %v1873 = vadd.f32 %v1824, %v1872
    %v1874 = vpop.f32.mrf.mxu0
    %v1875 = vadd.f32 %v1826, %v1874
    %1876 = vmatmul.bf16.gmra.mxu0 %v1253
    %v1877 = vpop.f32.mrf.mxu0
    %v1878 = vadd.f32 %v1829, %v1877
    %v1879 = vpop.f32.mrf.mxu0
    %v1880 = vadd.f32 %v1831, %v1879
    %1881 = vmatmul.bf16.gmra.mxu0 %v1261
    %v1882 = vpop.f32.mrf.mxu0
    %v1883 = vadd.f32 %v1834, %v1882
    %v1884 = vpop.f32.mrf.mxu0
    %v1885 = vadd.f32 %v1836, %v1884
    %1886 = vmatmul.bf16.gmra.mxu0 %v1269
    %v1887 = vpop.f32.mrf.mxu0
    %v1888 = vadd.f32 %v1839, %v1887
    %v1889 = vpop.f32.mrf.mxu0
    %v1890 = vadd.f32 %v1841, %v1889
    %1891 = vmatmul.bf16.gmra.mxu0 %v1277
    %v1892 = vpop.f32.mrf.mxu0
    %v1893 = vadd.f32 %v1844, %v1892
    %v1894 = vpop.f32.mrf.mxu0
    %v1895 = vadd.f32 %v1846, %v1894
    %1896 = vmatmul.bf16.gmra.mxu0 %v1285
    %v1897 = vpop.f32.mrf.mxu0
    %v1898 = vadd.f32 %v1849, %v1897
    %v1899 = vpop.f32.mrf.mxu0
    %v1900 = vadd.f32 %v1851, %v1899
    %1901 = vdwg.mxu0
    %1902 = vmatpush.bf16.msra.mxu0 %v1699
    %1903 = vmatpush.bf16.msra.mxu0 %v1698
    %1904 = vmatpush.bf16.msra.mxu0 %v1697
    %1905 = vmatpush.bf16.msra.mxu0 %v1696
    %1906 = vmatpush.bf16.msra.mxu0 %v1695
    %1907 = vmatpush.bf16.msra.mxu0 %v1694
    %1908 = vmatpush.bf16.msra.mxu0 %v1693
    %1909 = vmatpush.bf16.msra.mxu0 %v1692
    %1910 = vmatmul.bf16.gmra.mxu0 %v1230
    %v1911 = vpop.f32.mrf.mxu0
    %v1912 = vadd.f32 %v1863, %v1911
    %v1913 = vpop.f32.mrf.mxu0
    %v1914 = vadd.f32 %v1865, %v1913
    %1915 = vmatmul.bf16.gmra.mxu0 %v1238
    %v1916 = vpop.f32.mrf.mxu0
    %v1917 = vadd.f32 %v1868, %v1916
    %v1918 = vpop.f32.mrf.mxu0
    %v1919 = vadd.f32 %v1870, %v1918
    %1920 = vmatmul.bf16.gmra.mxu0 %v1246
    %v1921 = vpop.f32.mrf.mxu0
    %v1922 = vadd.f32 %v1873, %v1921
    %v1923 = vpop.f32.mrf.mxu0
    %v1924 = vadd.f32 %v1875, %v1923
    %1925 = vmatmul.bf16.gmra.mxu0 %v1254
    %v1926 = vpop.f32.mrf.mxu0
    %v1927 = vadd.f32 %v1878, %v1926
    %v1928 = vpop.f32.mrf.mxu0
    %v1929 = vadd.f32 %v1880, %v1928
    %1930 = vmatmul.bf16.gmra.mxu0 %v1262
    %v1931 = vpop.f32.mrf.mxu0
    %v1932 = vadd.f32 %v1883, %v1931
    %v1933 = vpop.f32.mrf.mxu0
    %v1934 = vadd.f32 %v1885, %v1933
    %1935 = vmatmul.bf16.gmra.mxu0 %v1270
    %v1936 = vpop.f32.mrf.mxu0
    %v1937 = vadd.f32 %v1888, %v1936
    %v1938 = vpop.f32.mrf.mxu0
    %v1939 = vadd.f32 %v1890, %v1938
    %1940 = vmatmul.bf16.gmra.mxu0 %v1278
    %v1941 = vpop.f32.mrf.mxu0
    %v1942 = vadd.f32 %v1893, %v1941
    %v1943 = vpop.f32.mrf.mxu0
    %v1944 = vadd.f32 %v1895, %v1943
    %1945 = vmatmul.bf16.gmra.mxu0 %v1286
    %v1946 = vpop.f32.mrf.mxu0
    %v1947 = vadd.f32 %v1898, %v1946
    %v1948 = vpop.f32.mrf.mxu0
    %v1949 = vadd.f32 %v1900, %v1948
    %1950 = vdwg.mxu0
    %1951 = vmatpush.bf16.msra.mxu0 %v1707
    %1952 = vmatpush.bf16.msra.mxu0 %v1706
    %1953 = vmatpush.bf16.msra.mxu0 %v1705
    %1954 = vmatpush.bf16.msra.mxu0 %v1704
    %1955 = vmatpush.bf16.msra.mxu0 %v1703
    %1956 = vmatpush.bf16.msra.mxu0 %v1702
    %1957 = vmatpush.bf16.msra.mxu0 %v1701
    %1958 = vmatpush.bf16.msra.mxu0 %v1700
    %1959 = vmatmul.bf16.gmra.mxu0 %v1231
    %v1960 = vpop.f32.mrf.mxu0
    %v1961 = vadd.f32 %v1912, %v1960
    %v1962 = vpop.f32.mrf.mxu0
    %v1963 = vadd.f32 %v1914, %v1962
    %1964 = vmatmul.bf16.gmra.mxu0 %v1239
    %v1965 = vpop.f32.mrf.mxu0
    %v1966 = vadd.f32 %v1917, %v1965
    %v1967 = vpop.f32.mrf.mxu0
    %v1968 = vadd.f32 %v1919, %v1967
    %1969 = vmatmul.bf16.gmra.mxu0 %v1247
    %v1970 = vpop.f32.mrf.mxu0
    %v1971 = vadd.f32 %v1922, %v1970
    %v1972 = vpop.f32.mrf.mxu0
    %v1973 = vadd.f32 %v1924, %v1972
    %1974 = vmatmul.bf16.gmra.mxu0 %v1255
    %v1975 = vpop.f32.mrf.mxu0
    %v1976 = vadd.f32 %v1927, %v1975
    %v1977 = vpop.f32.mrf.mxu0
    %v1978 = vadd.f32 %v1929, %v1977
    %1979 = vmatmul.bf16.gmra.mxu0 %v1263
    %v1980 = vpop.f32.mrf.mxu0
    %v1981 = vadd.f32 %v1932, %v1980
    %v1982 = vpop.f32.mrf.mxu0
    %v1983 = vadd.f32 %v1934, %v1982
    %1984 = vmatmul.bf16.gmra.mxu0 %v1271
    %v1985 = vpop.f32.mrf.mxu0
    %v1986 = vadd.f32 %v1937, %v1985
    %v1987 = vpop.f32.mrf.mxu0
    %v1988 = vadd.f32 %v1939, %v1987
    %1989 = vmatmul.bf16.gmra.mxu0 %v1279
    %v1990 = vpop.f32.mrf.mxu0
    %v1991 = vadd.f32 %v1942, %v1990
    %v1992 = vpop.f32.mrf.mxu0
    %v1993 = vadd.f32 %v1944, %v1992
    %1994 = vmatmul.bf16.gmra.mxu0 %v1287
    %v1995 = vpop.f32.mrf.mxu0
    %v1996 = vadd.f32 %v1947, %v1995
    %v1997 = vpop.f32.mrf.mxu0
    %v1998 = vadd.f32 %v1949, %v1997
    %1999 = vdwg.mxu0
    %2000 = vmatpush.bf16.msra.mxu0 %v1715
    %2001 = vmatpush.bf16.msra.mxu0 %v1714
    %2002 = vmatpush.bf16.msra.mxu0 %v1713
    %2003 = vmatpush.bf16.msra.mxu0 %v1712
    %2004 = vmatpush.bf16.msra.mxu0 %v1711
    %2005 = vmatpush.bf16.msra.mxu0 %v1710
    %2006 = vmatpush.bf16.msra.mxu0 %v1709
    %2007 = vmatpush.bf16.msra.mxu0 %v1708
    %2008 = vmatmul.bf16.gmra.mxu0 %v1232
    %v2009 = vpop.f32.mrf.mxu0
    %v2010 = vadd.f32 %v1961, %v2009
    %v2011 = vpop.f32.mrf.mxu0
    %v2012 = vadd.f32 %v1963, %v2011
    %2013 = vmatmul.bf16.gmra.mxu0 %v1240
    %v2014 = vpop.f32.mrf.mxu0
    %v2015 = vadd.f32 %v1966, %v2014
    %v2016 = vpop.f32.mrf.mxu0
    %v2017 = vadd.f32 %v1968, %v2016
    %2018 = vmatmul.bf16.gmra.mxu0 %v1248
    %v2019 = vpop.f32.mrf.mxu0
    %v2020 = vadd.f32 %v1971, %v2019
    %v2021 = vpop.f32.mrf.mxu0
    %v2022 = vadd.f32 %v1973, %v2021
    %2023 = vmatmul.bf16.gmra.mxu0 %v1256
    %v2024 = vpop.f32.mrf.mxu0
    %v2025 = vadd.f32 %v1976, %v2024
    %v2026 = vpop.f32.mrf.mxu0
    %v2027 = vadd.f32 %v1978, %v2026
    %2028 = vmatmul.bf16.gmra.mxu0 %v1264
    %v2029 = vpop.f32.mrf.mxu0
    %v2030 = vadd.f32 %v1981, %v2029
    %v2031 = vpop.f32.mrf.mxu0
    %v2032 = vadd.f32 %v1983, %v2031
    %2033 = vmatmul.bf16.gmra.mxu0 %v1272
    %v2034 = vpop.f32.mrf.mxu0
    %v2035 = vadd.f32 %v1986, %v2034
    %v2036 = vpop.f32.mrf.mxu0
    %v2037 = vadd.f32 %v1988, %v2036
    %2038 = vmatmul.bf16.gmra.mxu0 %v1280
    %v2039 = vpop.f32.mrf.mxu0
    %v2040 = vadd.f32 %v1991, %v2039
    %v2041 = vpop.f32.mrf.mxu0
    %v2042 = vadd.f32 %v1993, %v2041
    %2043 = vmatmul.bf16.gmra.mxu0 %v1288
    %v2044 = vpop.f32.mrf.mxu0
    %v2045 = vadd.f32 %v1996, %v2044
    %v2046 = vpop.f32.mrf.mxu0
    %v2047 = vadd.f32 %v1998, %v2046
    %2048 = vdwg.mxu0
    %2049 = vmatpush.bf16.msra.mxu0 %v1723
    %2050 = vmatpush.bf16.msra.mxu0 %v1722
    %2051 = vmatpush.bf16.msra.mxu0 %v1721
    %2052 = vmatpush.bf16.msra.mxu0 %v1720
    %2053 = vmatpush.bf16.msra.mxu0 %v1719
    %2054 = vmatpush.bf16.msra.mxu0 %v1718
    %2055 = vmatpush.bf16.msra.mxu0 %v1717
    %2056 = vmatpush.bf16.msra.mxu0 %v1716
    %2057 = vmatmul.bf16.gmra.mxu0 %v1233
    %v2058 = vpop.f32.mrf.mxu0
    %v2059 = vadd.f32 %v2010, %v2058
    %v2060 = vpop.f32.mrf.mxu0
    %v2061 = vadd.f32 %v2012, %v2060
    %2062 = vmatmul.bf16.gmra.mxu0 %v1241
    %v2063 = vpop.f32.mrf.mxu0
    %v2064 = vadd.f32 %v2015, %v2063
    %v2065 = vpop.f32.mrf.mxu0
    %v2066 = vadd.f32 %v2017, %v2065
    %2067 = vmatmul.bf16.gmra.mxu0 %v1249
    %v2068 = vpop.f32.mrf.mxu0
    %v2069 = vadd.f32 %v2020, %v2068
    %v2070 = vpop.f32.mrf.mxu0
    %v2071 = vadd.f32 %v2022, %v2070
    %2072 = vmatmul.bf16.gmra.mxu0 %v1257
    %v2073 = vpop.f32.mrf.mxu0
    %v2074 = vadd.f32 %v2025, %v2073
    %v2075 = vpop.f32.mrf.mxu0
    %v2076 = vadd.f32 %v2027, %v2075
    %2077 = vmatmul.bf16.gmra.mxu0 %v1265
    %v2078 = vpop.f32.mrf.mxu0
    %v2079 = vadd.f32 %v2030, %v2078
    %v2080 = vpop.f32.mrf.mxu0
    %v2081 = vadd.f32 %v2032, %v2080
    %2082 = vmatmul.bf16.gmra.mxu0 %v1273
    %v2083 = vpop.f32.mrf.mxu0
    %v2084 = vadd.f32 %v2035, %v2083
    %v2085 = vpop.f32.mrf.mxu0
    %v2086 = vadd.f32 %v2037, %v2085
    %2087 = vmatmul.bf16.gmra.mxu0 %v1281
    %v2088 = vpop.f32.mrf.mxu0
    %v2089 = vadd.f32 %v2040, %v2088
    %v2090 = vpop.f32.mrf.mxu0
    %v2091 = vadd.f32 %v2042, %v2090
    %2092 = vmatmul.bf16.gmra.mxu0 %v1289
    %v2093 = vpop.f32.mrf.mxu0
    %v2094 = vadd.f32 %v2045, %v2093
    %v2095 = vpop.f32.mrf.mxu0
    %v2096 = vadd.f32 %v2047, %v2095
    %2097 = vdwg.mxu0
    %2098 = vmatpush.bf16.msra.mxu0 %v1731
    %2099 = vmatpush.bf16.msra.mxu0 %v1730
    %2100 = vmatpush.bf16.msra.mxu0 %v1729
    %2101 = vmatpush.bf16.msra.mxu0 %v1728
    %2102 = vmatpush.bf16.msra.mxu0 %v1727
    %2103 = vmatpush.bf16.msra.mxu0 %v1726
    %2104 = vmatpush.bf16.msra.mxu0 %v1725
    %2105 = vmatpush.bf16.msra.mxu0 %v1724
    %2106 = vmatmul.bf16.gmra.mxu0 %v1234
    %v2107 = vpop.f32.mrf.mxu0
    %v2108 = vadd.f32 %v2059, %v2107
    %v2109 = vpop.f32.mrf.mxu0
    %v2110 = vadd.f32 %v2061, %v2109
    %2111 = vmatmul.bf16.gmra.mxu0 %v1242
    %v2112 = vpop.f32.mrf.mxu0
    %v2113 = vadd.f32 %v2064, %v2112
    %v2114 = vpop.f32.mrf.mxu0
    %v2115 = vadd.f32 %v2066, %v2114
    %2116 = vmatmul.bf16.gmra.mxu0 %v1250
    %v2117 = vpop.f32.mrf.mxu0
    %v2118 = vadd.f32 %v2069, %v2117
    %v2119 = vpop.f32.mrf.mxu0
    %v2120 = vadd.f32 %v2071, %v2119
    %2121 = vmatmul.bf16.gmra.mxu0 %v1258
    %v2122 = vpop.f32.mrf.mxu0
    %v2123 = vadd.f32 %v2074, %v2122
    %v2124 = vpop.f32.mrf.mxu0
    %v2125 = vadd.f32 %v2076, %v2124
    %2126 = vmatmul.bf16.gmra.mxu0 %v1266
    %v2127 = vpop.f32.mrf.mxu0
    %v2128 = vadd.f32 %v2079, %v2127
    %v2129 = vpop.f32.mrf.mxu0
    %v2130 = vadd.f32 %v2081, %v2129
    %2131 = vmatmul.bf16.gmra.mxu0 %v1274
    %v2132 = vpop.f32.mrf.mxu0
    %v2133 = vadd.f32 %v2084, %v2132
    %v2134 = vpop.f32.mrf.mxu0
    %v2135 = vadd.f32 %v2086, %v2134
    %2136 = vmatmul.bf16.gmra.mxu0 %v1282
    %v2137 = vpop.f32.mrf.mxu0
    %v2138 = vadd.f32 %v2089, %v2137
    %v2139 = vpop.f32.mrf.mxu0
    %v2140 = vadd.f32 %v2091, %v2139
    %2141 = vmatmul.bf16.gmra.mxu0 %v1290
    %v2142 = vpop.f32.mrf.mxu0
    %v2143 = vadd.f32 %v2094, %v2142
    %v2144 = vpop.f32.mrf.mxu0
    %v2145 = vadd.f32 %v2096, %v2144
    %2146 = vdwg.mxu0
    %2147 = vmatpush.bf16.msra.mxu0 %v1739
    %2148 = vmatpush.bf16.msra.mxu0 %v1738
    %2149 = vmatpush.bf16.msra.mxu0 %v1737
    %2150 = vmatpush.bf16.msra.mxu0 %v1736
    %2151 = vmatpush.bf16.msra.mxu0 %v1735
    %2152 = vmatpush.bf16.msra.mxu0 %v1734
    %2153 = vmatpush.bf16.msra.mxu0 %v1733
    %2154 = vmatpush.bf16.msra.mxu0 %v1732
    %2155 = vmatmul.bf16.gmra.mxu0 %v1235
    %v2156 = vpop.f32.mrf.mxu0
    %v2157 = vadd.f32 %v2108, %v2156
    %v2158 = vpop.f32.mrf.mxu0
    %v2159 = vadd.f32 %v2110, %v2158
    %2160 = vmatmul.bf16.gmra.mxu0 %v1243
    %v2161 = vpop.f32.mrf.mxu0
    %v2162 = vadd.f32 %v2113, %v2161
    %v2163 = vpop.f32.mrf.mxu0
    %v2164 = vadd.f32 %v2115, %v2163
    %2165 = vmatmul.bf16.gmra.mxu0 %v1251
    %v2166 = vpop.f32.mrf.mxu0
    %v2167 = vadd.f32 %v2118, %v2166
    %v2168 = vpop.f32.mrf.mxu0
    %v2169 = vadd.f32 %v2120, %v2168
    %2170 = vmatmul.bf16.gmra.mxu0 %v1259
    %v2171 = vpop.f32.mrf.mxu0
    %v2172 = vadd.f32 %v2123, %v2171
    %v2173 = vpop.f32.mrf.mxu0
    %v2174 = vadd.f32 %v2125, %v2173
    %2175 = vmatmul.bf16.gmra.mxu0 %v1267
    %v2176 = vpop.f32.mrf.mxu0
    %v2177 = vadd.f32 %v2128, %v2176
    %v2178 = vpop.f32.mrf.mxu0
    %v2179 = vadd.f32 %v2130, %v2178
    %2180 = vmatmul.bf16.gmra.mxu0 %v1275
    %v2181 = vpop.f32.mrf.mxu0
    %v2182 = vadd.f32 %v2133, %v2181
    %v2183 = vpop.f32.mrf.mxu0
    %v2184 = vadd.f32 %v2135, %v2183
    %2185 = vmatmul.bf16.gmra.mxu0 %v1283
    %v2186 = vpop.f32.mrf.mxu0
    %v2187 = vadd.f32 %v2138, %v2186
    %v2188 = vpop.f32.mrf.mxu0
    %v2189 = vadd.f32 %v2140, %v2188
    %2190 = vmatmul.bf16.gmra.mxu0 %v1291
    %v2191 = vpop.f32.mrf.mxu0
    %v2192 = vadd.f32 %v2143, %v2191
    %v2193 = vpop.f32.mrf.mxu0
    %v2194 = vadd.f32 %v2145, %v2193
    %2195 = vdwg.mxu0
    %v2196 = vlaneseq
    %v2197 = vshrl.u32 %v2196, 7
    %v2198 = vld [vmem:[%s49] sm:$0x1]
    %v2199 = vperm.slane %v2198, 0
    %vm2200 = vcmp.eq.s32.totalorder %v2197, %v2199
    %v2201 = vsel %vm2200, 1, 0
    %v2202 = vcvt.s32.f32 %v2201
    %v2203 = vpack.c.bf16 %v2202, %v2202
    %v2204 = vld [vmem:[#allocation5] sm:$0xff]
    %v2205 = vpack.c.bf16 %v2159, %v2157
    %v2206 = vpack.c.bf16 %v2164, %v2162
    %v2207 = vpack.c.bf16 %v2169, %v2167
    %v2208 = vpack.c.bf16 %v2174, %v2172
    %v2209 = vpack.c.bf16 %v2179, %v2177
    %v2210 = vpack.c.bf16 %v2184, %v2182
    %v2211 = vpack.c.bf16 %v2189, %v2187
    %v2212 = vpack.c.bf16 %v2194, %v2192
    %2213 = vmatpush.bf16.msra.mxu0 %v2212
    %2214 = vmatpush.bf16.msra.mxu0 %v2211
    %2215 = vmatpush.bf16.msra.mxu0 %v2210
    %2216 = vmatpush.bf16.msra.mxu0 %v2209
    %2217 = vmatpush.bf16.msra.mxu0 %v2208
    %2218 = vmatpush.bf16.msra.mxu0 %v2207
    %2219 = vmatpush.bf16.msra.mxu0 %v2206
    %2220 = vmatpush.bf16.msra.mxu0 %v2205
    %2221 = vmatmul.bf16.gmra.mxu0 %v2203
    %v2222 = vpop.f32.mrf.mxu0
    %v2223 = vadd.f32 0.0, %v2222
    %v2224 = vpop.f32.mrf.mxu0
    %2225 = vdwg.mxu0
    %v2226 = vadd.f32 %v2204, %v2223
    %2227 = vst [vmem:[#allocation5] sm:$0xff] %v2226
    // Predicated region
    $region74: #{_tt_embedding_bag_fwd.1} parent=1 // pred_check
      _
    $region75: #{_tt_embedding_bag_fwd.1} parent=1 // pred_check_branch
      %2229 = sbr.rel (0) target = $region77
    $region76: #{_tt_embedding_bag_fwd.1} parent=1 // pred_region
      %2231 = vsyncadd [#allocation6], 0
      %s2233 = sshll.u32 [#allocation5], 4
      %s2234 = int_to_ptr.vmem [resolvable:$true] %s2233
      %s2235 = sshll.u32 %s5, 4
      %s2236 = int_to_ptr.hbm [resolvable:$true] %s2235
      %2238 = dma.vmem_to_hbm [thread:$0]  %s2234, 128, %s2236, [#allocation6]
    $region77: #{_tt_embedding_bag_fwd.1} parent=1 // pred_fallthru
      _
    // Predicated region
    $region78: #{_tt_embedding_bag_fwd.1} parent=1 // pred_check
      _
    $region79: #{_tt_embedding_bag_fwd.1} parent=1 // pred_check_branch
      %2240 = sbr.rel (0) target = $region81
    $region80: #{_tt_embedding_bag_fwd.1} parent=1 // pred_region
      %2242 = dma.done [#allocation6], 128
    $region81: #{_tt_embedding_bag_fwd.1} parent=1 // pred_fallthru
      _
    %2243 = vsyncpa [#allocation6], 1

</llo_original>
